<compile_context>
chip_gen: v7x
topology: tpu7x:2x2x1
jax: 0.10.0
libtpu: 0.0.40
codegen_flags: <defaults>
</compile_context>

<pallas_src>
import functools

import jax
import jax.numpy as jnp
from jax import lax
from jax.experimental import pallas as pl
from jax.experimental.pallas import tpu as pltpu


def _mha_kernel(q_ref, k_ref, v_ref, wqkv_ref, bqkv_ref, wo_ref, bo_ref,
                out_ref, acc_ref, *, heads_per_block, head_dim):
    # q_ref/out_ref: (1, tq, E) block; k_ref/v_ref: (1, S, E) block (resident).
    # wqkv_ref: (1, 3, E, Hb*hd) head-block q/k/v weights (q pre-scaled).
    # bqkv_ref: (ng, 3, Hb*hd) ALL q/k/v biases, VMEM-resident.
    # wo_ref:   (1, Hb*hd, E) head-block slice of the output projection.
    # bo_ref:   (1, E) output bias (resident).
    # acc_ref:  (tq, E) fp32 accumulator, persistent across the head-block axis.
    g = pl.program_id(2)                       # head-block index (reduction axis)

    @pl.when(g == 0)
    def _():
        acc_ref[...] = jnp.zeros_like(acc_ref)

    xq = q_ref[0]                              # (tq, E)
    xk = k_ref[0]                              # (S,  E)
    xv = v_ref[0]                              # (S,  E)
    in_dtype = q_ref.dtype

    bblk = bqkv_ref[g]                         # (3, Hb*hd), resident (no DMA)

    # Head-block projections: N = Hb*hd wide on the MXU, fp32 accumulation,
    # cast back to the input dtype for the attention matmuls (bf16 fast path).
    q_h = (jnp.dot(xq, wqkv_ref[0, 0], preferred_element_type=jnp.float32)
           + bblk[0:1, :]).astype(in_dtype)
    k_h = (jnp.dot(xk, wqkv_ref[0, 1], preferred_element_type=jnp.float32)
           + bblk[1:2, :]).astype(in_dtype)
    v_h = (jnp.dot(xv, wqkv_ref[0, 2], preferred_element_type=jnp.float32)
           + bblk[2:3, :]).astype(in_dtype)

    # Per-head attention inside the block (static unrolled loop; head slices
    # are static lane slices of the wide projections).
    ctx_parts = []
    for hh in range(heads_per_block):
        lo = hh * head_dim
        qh = q_h[:, lo:lo + head_dim]          # (tq, hd)
        kh = k_h[:, lo:lo + head_dim]          # (S,  hd)
        vh = v_h[:, lo:lo + head_dim]          # (S,  hd)

        # Scores (tq, S): contract head_dim of both operands (rhs-contraction
        # on the MXU; no XLU transpose of kh).
        scores = lax.dot_general(qh, kh, (((1,), (1,)), ((), ())),
                                 preferred_element_type=jnp.float32)

        # Numerically stable softmax; normalization deferred past P@V so only
        # (tq, hd) values are scaled (not the (tq, S) probability matrix).
        m = jnp.max(scores, axis=-1, keepdims=True)
        e = jnp.exp(scores - m)
        denom = jnp.sum(e, axis=-1, keepdims=True)

        # Eval-mode dropout on the attention weights == identity.

        ctx_un = jnp.dot(e.astype(in_dtype), vh,
                         preferred_element_type=jnp.float32)     # (tq, hd)
        ctx_parts.append(ctx_un * pl.reciprocal(denom, approx=True))

    ctx = jnp.concatenate(ctx_parts, axis=-1).astype(in_dtype)   # (tq, Hb*hd)

    # This head-block's contribution to the output projection: one wide
    # (tq, Hb*hd) @ (Hb*hd, E) contraction, accumulated over head blocks.
    acc_ref[...] += jnp.dot(ctx, wo_ref[0], preferred_element_type=jnp.float32)

    @pl.when(g == pl.num_programs(2) - 1)
    def _():
        out_ref[0] = (acc_ref[...] + bo_ref[...]).astype(out_ref.dtype)


def _choose_head_block(num_heads, head_dim, target_width=256):
    """Smallest divisor Hb of num_heads with Hb*head_dim >= target_width
    (256-wide MXU on v6e/v7x); falls back to all heads in one block."""
    for hb in range(1, num_heads + 1):
        if num_heads % hb == 0 and hb * head_dim >= target_width:
            return hb
    return num_heads


def _vmem_budget_bytes():
    """Per-core VMEM capacity with ~25% headroom (compiler-internal scratch,
    double-buffering slack). 64 MiB on v7x, 128 MiB on v5e/v6e."""
    cap = 128 * 1024 * 1024
    try:
        info = pltpu.get_tpu_info()
        cap = int(getattr(info, "vmem_capacity_bytes", cap))
    except Exception:
        pass
    return (cap * 3) // 4


def _step_vmem_bytes(S, tq, E, hbw, itemsize):
    """Rough per-step VMEM working set for the chosen tile sizes."""
    act = 2 * itemsize * (2 * tq * E + 2 * S * E)            # q,out + k,v (x2 buf)
    wts = 2 * 4 * (3 * E * hbw + hbw * E) + 4 * (3 * 8 * hbw + 8 * E)
    scratch = 4 * tq * E                                     # fp32 accumulator
    temps = 4 * (2 * tq * S + (2 * S + tq) * hbw + tq * hbw) # scores/exp, q/k/v_h, ctx
    return act + wts + scratch + temps


def _choose_q_tile(S, E, hbw, itemsize, budget):
    """Largest query tile (divisor of S, multiple of 8 or S itself) whose
    per-step working set fits the VMEM budget."""
    cands = [d for d in range(8, S + 1, 8) if S % d == 0]
    cands.append(S)
    cands = sorted(set(cands), reverse=True)
    for d in cands:
        if _step_vmem_bytes(S, d, E, hbw, itemsize) <= budget:
            return d
    return cands[-1]


def prepare_params(params, num_heads, head_block):
    """One-time layout prep of PyTorch-style weights (do NOT call per step).

    PyTorch Linear stores W as (out, in) with y = x @ W.T + b.  We pre-slice
    per head-block and pre-transpose so the kernel computes x @ W directly,
    and fold the 1/sqrt(head_dim) attention scale into the q projection.
    """
    E = params['q_w'].shape[0]
    hd = E // num_heads
    ng = num_heads // head_block
    hbw = head_block * hd
    scale = 1.0 / (hd ** 0.5)

    def per_block_in(w):   # (E_out, E_in) -> (ng, E_in, hbw)
        return jnp.transpose(w.T.reshape(E, ng, hbw), (1, 0, 2))

    wq = per_block_in(params['q_w']) * scale
    wk = per_block_in(params['k_w'])
    wv = per_block_in(params['v_w'])
    wqkv = jnp.stack([wq, wk, wv], axis=1)                    # (ng, 3, E, hbw)

    bq = params['q_b'].reshape(ng, hbw) * scale
    bk = params['k_b'].reshape(ng, hbw)
    bv = params['v_b'].reshape(ng, hbw)
    bqkv = jnp.stack([bq, bk, bv], axis=1)                    # (ng, 3, hbw)

    wo = params['o_w'].T.reshape(ng, hbw, E)                  # (ng, hbw, E)
    bo = params['o_b'].reshape(1, E)                          # (1, E)
    return dict(wqkv=wqkv, bqkv=bqkv, wo=wo, bo=bo)


def multihead_attention(query, key, value, prepared, num_heads, head_block):
    """query/key/value: (B, S, E). prepared: output of prepare_params."""
    B, S, E = query.shape
    head_dim = E // num_heads
    assert head_dim * num_heads == E
    assert num_heads % head_block == 0
    hbw = head_block * head_dim
    ng = num_heads // head_block

    itemsize = jnp.dtype(query.dtype).itemsize
    budget = _vmem_budget_bytes()
    tq = _choose_q_tile(S, E, hbw, itemsize, budget)
    nqt = S // tq

    q_spec = pl.BlockSpec((1, tq, E), lambda b, qt, g: (b, qt, 0))
    kv_spec = pl.BlockSpec((1, S, E), lambda b, qt, g: (b, 0, 0))     # resident per-batch
    out_spec = pl.BlockSpec((1, tq, E), lambda b, qt, g: (b, qt, 0))
    wqkv_spec = pl.BlockSpec((1, 3, E, hbw), lambda b, qt, g: (g, 0, 0, 0))
    bqkv_spec = pl.BlockSpec((ng, 3, hbw), lambda b, qt, g: (0, 0, 0))  # resident
    wo_spec = pl.BlockSpec((1, hbw, E), lambda b, qt, g: (g, 0, 0))
    bo_spec = pl.BlockSpec((1, E), lambda b, qt, g: (0, 0))             # resident

    vmem_limit = min(budget,
                     max(32 * 1024 * 1024,
                         int(1.3 * _step_vmem_bytes(S, tq, E, hbw, itemsize))))

    kernel = functools.partial(_mha_kernel,
                               heads_per_block=head_block, head_dim=head_dim)

    return pl.pallas_call(
        kernel,
        out_shape=jax.ShapeDtypeStruct((B, S, E), query.dtype),
        grid_spec=pltpu.PrefetchScalarGridSpec(
            num_scalar_prefetch=0,
            grid=(B, nqt, ng),
            in_specs=[q_spec, kv_spec, kv_spec,
                      wqkv_spec, bqkv_spec, wo_spec, bo_spec],
            out_specs=out_spec,
            scratch_shapes=[pltpu.VMEM((tq, E), jnp.float32)],
        ),
        compiler_params=pltpu.CompilerParams(
            dimension_semantics=("parallel", "parallel", "arbitrary"),
            vmem_limit_bytes=vmem_limit,
        ),
    )(query, key, value,
      prepared['wqkv'], prepared['bqkv'], prepared['wo'], prepared['bo'])


def _init_linear(key, fan_in, fan_out):
    # PyTorch nn.Linear default init: U(-1/sqrt(fan_in), 1/sqrt(fan_in))
    kw, kb = jax.random.split(key)
    bound = 1.0 / (fan_in ** 0.5)
    w = jax.random.uniform(kw, (fan_out, fan_in), jnp.float32, -bound, bound)
    b = jax.random.uniform(kb, (fan_out,), jnp.float32, -bound, bound)
    return w, b


def _reference(query, key, value, params, num_heads):
    B, S, E = query.shape
    hd = E // num_heads

    def lin(x, w, b):
        return x @ w.T + b

    q = lin(query, params['q_w'], params['q_b']).reshape(B, S, num_heads, hd).transpose(0, 2, 1, 3)
    k = lin(key, params['k_w'], params['k_b']).reshape(B, S, num_heads, hd).transpose(0, 2, 1, 3)
    v = lin(value, params['v_w'], params['v_b']).reshape(B, S, num_heads, hd).transpose(0, 2, 1, 3)
    scores = jnp.einsum('bhsd,bhtd->bhst', q, k) / (hd ** 0.5)
    attn = jax.nn.softmax(scores, axis=-1)
    ctx = jnp.einsum('bhst,bhtd->bhsd', attn, v).transpose(0, 2, 1, 3).reshape(B, S, E)
    return lin(ctx, params['o_w'], params['o_b'])


if __name__ == "__main__":
    embed_dim = 32
    num_heads = 4
    B, S = 2, 8

    root = jax.random.PRNGKey(0)
    kq, kk, kv, ko, kx1, kx2, kx3 = jax.random.split(root, 7)

    q_w, q_b = _init_linear(kq, embed_dim, embed_dim)
    k_w, k_b = _init_linear(kk, embed_dim, embed_dim)
    v_w, v_b = _init_linear(kv, embed_dim, embed_dim)
    o_w, o_b = _init_linear(ko, embed_dim, embed_dim)
    params = dict(q_w=q_w, q_b=q_b, k_w=k_w, k_b=k_b,
                  v_w=v_w, v_b=v_b, o_w=o_w, o_b=o_b)

    query = jax.random.normal(kx1, (B, S, embed_dim), jnp.float32)
    key = jax.random.normal(kx2, (B, S, embed_dim), jnp.float32)
    value = jax.random.normal(kx3, (B, S, embed_dim), jnp.float32)

    head_dim = embed_dim // num_heads
    head_block = _choose_head_block(num_heads, head_dim)     # all 4 heads here
    prepared = prepare_params(params, num_heads, head_block)  # one-time layout prep

    out = multihead_attention(query, key, value, prepared, num_heads, head_block)
    out = jax.block_until_ready(out)

    ref = _reference(query, key, value, params, num_heads)
    assert out.shape == (B, S, embed_dim)
    # tolerance accommodates the approx (EUP) reciprocal in the softmax denominator
    assert jnp.allclose(out, ref, atol=2e-3, rtol=2e-3), "mismatch vs reference"

    print("KERNEL_OK")
</pallas_src>

<mosaic_0001>
module attributes {stable_mosaic.version = 11 : i64} {
  func.func @_mha_kernel(%arg0: i32, %arg1: i32, %arg2: i32, %arg3: memref<1x8x32xf32, #tpu.memory_space<vmem>>, %arg4: memref<1x8x32xf32, #tpu.memory_space<vmem>>, %arg5: memref<1x8x32xf32, #tpu.memory_space<vmem>>, %arg6: memref<1x3x32x32xf32, #tpu.memory_space<vmem>>, %arg7: memref<1x3x32xf32, #tpu.memory_space<vmem>>, %arg8: memref<1x32x32xf32, #tpu.memory_space<vmem>>, %arg9: memref<1x32xf32, #tpu.memory_space<vmem>>, %arg10: memref<1x8x32xf32, #tpu.memory_space<vmem>>, %arg11: memref<8x32xf32, #tpu.memory_space<vmem>>) attributes {dimension_semantics = [#tpu.dimension_semantics<parallel>, #tpu.dimension_semantics<parallel>, #tpu.dimension_semantics<arbitrary>], iteration_bounds = array<i64: 2, 1, 1>, scalar_prefetch = 0 : i64, scratch_operands = 1 : i64, tpu.core_type = #tpu.core_type<tc>, window_params = [{transform_indices = @transform_0, window_bounds = array<i64: 1, 8, 32>}, {transform_indices = @transform_1, window_bounds = array<i64: 1, 8, 32>}, {transform_indices = @transform_2, window_bounds = array<i64: 1, 8, 32>}, {transform_indices = @transform_3, window_bounds = array<i64: 1, 3, 32, 32>}, {pipeline_mode = #tpu.pipeline_mode<synchronous>, transform_indices = @transform_4, window_bounds = array<i64: 1, 3, 32>}, {transform_indices = @transform_5, window_bounds = array<i64: 1, 32, 32>}, {pipeline_mode = #tpu.pipeline_mode<synchronous>, transform_indices = @transform_6, window_bounds = array<i64: 1, 32>}, {transform_indices = @transform_7, window_bounds = array<i64: 1, 8, 32>}]} {
    %c0_i32 = arith.constant 0 : i32
    %0 = arith.cmpi eq, %arg2, %c0_i32 : i32
    %1 = arith.extui %0 : i1 to i32
    %c0_i32_0 = arith.constant 0 : i32
    %2 = arith.cmpi ne, %1, %c0_i32_0 : i32
    scf.if %2 {
      %cst_49 = arith.constant 0.000000e+00 : f32
      %100 = vector.broadcast %cst_49 : f32 to vector<8x32xf32>
      %c0_50 = arith.constant 0 : index
      %c0_51 = arith.constant 0 : index
      %101 = vector.load %arg11[%c0_50, %c0_51] : memref<8x32xf32, #tpu.memory_space<vmem>>, vector<8x32xf32>
      tpu.vector_store %arg11[%c0_50, %c0_51], %100 {strides = array<i32>} : memref<8x32xf32, #tpu.memory_space<vmem>>, vector<8x32xf32>,
    } else {
    }
    %c0 = arith.constant 0 : index
    %c0_1 = arith.constant 0 : index
    %c0_2 = arith.constant 0 : index
    %3 = vector.load %arg3[%c0, %c0_1, %c0_2] : memref<1x8x32xf32, #tpu.memory_space<vmem>>, vector<1x8x32xf32>
    %4 = vector.shape_cast %3 : vector<1x8x32xf32> to vector<8x32xf32>
    %c0_3 = arith.constant 0 : index
    %c0_4 = arith.constant 0 : index
    %c0_5 = arith.constant 0 : index
    %5 = vector.load %arg4[%c0_3, %c0_4, %c0_5] : memref<1x8x32xf32, #tpu.memory_space<vmem>>, vector<1x8x32xf32>
    %6 = vector.shape_cast %5 : vector<1x8x32xf32> to vector<8x32xf32>
    %c0_6 = arith.constant 0 : index
    %c0_7 = arith.constant 0 : index
    %c0_8 = arith.constant 0 : index
    %7 = vector.load %arg5[%c0_6, %c0_7, %c0_8] : memref<1x8x32xf32, #tpu.memory_space<vmem>>, vector<1x8x32xf32>
    %8 = vector.shape_cast %7 : vector<1x8x32xf32> to vector<8x32xf32>
    %9 = arith.index_cast %arg2 : i32 to index
    %c0_9 = arith.constant 0 : index
    %c0_10 = arith.constant 0 : index
    %10 = vector.load %arg7[%9, %c0_9, %c0_10] : memref<1x3x32xf32, #tpu.memory_space<vmem>>, vector<1x3x32xf32>
    %11 = vector.shape_cast %10 : vector<1x3x32xf32> to vector<3x32xf32>
    %c0_11 = arith.constant 0 : index
    %c0_12 = arith.constant 0 : index
    %c0_13 = arith.constant 0 : index
    %c0_14 = arith.constant 0 : index
    %12 = vector.load %arg6[%c0_11, %c0_12, %c0_13, %c0_14] : memref<1x3x32x32xf32, #tpu.memory_space<vmem>>, vector<1x1x32x32xf32>
    %13 = vector.shape_cast %12 : vector<1x1x32x32xf32> to vector<32x32xf32>
    %cst = arith.constant dense<0.000000e+00> : vector<8x32xf32>
    %14 = tpu.matmul %4, %13, %cst {dimension_numbers = #tpu.dot_dimension_numbers<[1], [0], [0], [1], [0, 0, 1, 1], [], []>} : vector<8x32xf32>, vector<32x32xf32>, vector<8x32xf32> -> vector<8x32xf32>
    %15 = vector.extract_strided_slice %11 {offsets = [0, 0], sizes = [1, 32], strides = [1, 1]} : vector<3x32xf32> to vector<1x32xf32>
    %16 = vector.broadcast %15 : vector<1x32xf32> to vector<8x32xf32>
    %17 = arith.addf %14, %16 : vector<8x32xf32>
    %c0_15 = arith.constant 0 : index
    %c1 = arith.constant 1 : index
    %c0_16 = arith.constant 0 : index
    %c0_17 = arith.constant 0 : index
    %18 = vector.load %arg6[%c0_15, %c1, %c0_16, %c0_17] : memref<1x3x32x32xf32, #tpu.memory_space<vmem>>, vector<1x1x32x32xf32>
    %19 = vector.shape_cast %18 : vector<1x1x32x32xf32> to vector<32x32xf32>
    %cst_18 = arith.constant dense<0.000000e+00> : vector<8x32xf32>
    %20 = tpu.matmul %6, %19, %cst_18 {dimension_numbers = #tpu.dot_dimension_numbers<[1], [0], [0], [1], [0, 0, 1, 1], [], []>} : vector<8x32xf32>, vector<32x32xf32>, vector<8x32xf32> -> vector<8x32xf32>
    %21 = vector.extract_strided_slice %11 {offsets = [1, 0], sizes = [1, 32], strides = [1, 1]} : vector<3x32xf32> to vector<1x32xf32>
    %22 = vector.broadcast %21 : vector<1x32xf32> to vector<8x32xf32>
    %23 = arith.addf %20, %22 : vector<8x32xf32>
    %c0_19 = arith.constant 0 : index
    %c2 = arith.constant 2 : index
    %c0_20 = arith.constant 0 : index
    %c0_21 = arith.constant 0 : index
    %24 = vector.load %arg6[%c0_19, %c2, %c0_20, %c0_21] : memref<1x3x32x32xf32, #tpu.memory_space<vmem>>, vector<1x1x32x32xf32>
    %25 = vector.shape_cast %24 : vector<1x1x32x32xf32> to vector<32x32xf32>
    %cst_22 = arith.constant dense<0.000000e+00> : vector<8x32xf32>
    %26 = tpu.matmul %8, %25, %cst_22 {dimension_numbers = #tpu.dot_dimension_numbers<[1], [0], [0], [1], [0, 0, 1, 1], [], []>} : vector<8x32xf32>, vector<32x32xf32>, vector<8x32xf32> -> vector<8x32xf32>
    %27 = vector.extract_strided_slice %11 {offsets = [2, 0], sizes = [1, 32], strides = [1, 1]} : vector<3x32xf32> to vector<1x32xf32>
    %28 = vector.broadcast %27 : vector<1x32xf32> to vector<8x32xf32>
    %29 = arith.addf %26, %28 : vector<8x32xf32>
    %30 = vector.extract_strided_slice %17 {offsets = [0, 0], sizes = [8, 8], strides = [1, 1]} : vector<8x32xf32> to vector<8x8xf32>
    %31 = vector.extract_strided_slice %23 {offsets = [0, 0], sizes = [8, 8], strides = [1, 1]} : vector<8x32xf32> to vector<8x8xf32>
    %32 = vector.extract_strided_slice %29 {offsets = [0, 0], sizes = [8, 8], strides = [1, 1]} : vector<8x32xf32> to vector<8x8xf32>
    %cst_23 = arith.constant dense<0.000000e+00> : vector<8x8xf32>
    %33 = tpu.matmul %30, %31, %cst_23 {dimension_numbers = #tpu.dot_dimension_numbers<[1], [1], [0], [0], [0, 0, 1, 0], [], []>} : vector<8x8xf32>, vector<8x8xf32>, vector<8x8xf32> -> vector<8x8xf32>
    %cst_24 = arith.constant dense<0xFF800000> : vector<8xf32>
    %34 = vector.multi_reduction <maximumf>, %33, %cst_24 [1] : vector<8x8xf32> to vector<8xf32>
    %35 = vector.shape_cast %34 : vector<8xf32> to vector<8x1xf32>
    %36 = vector.broadcast %35 : vector<8x1xf32> to vector<8x8xf32>
    %37 = arith.subf %33, %36 : vector<8x8xf32>
    %38 = math.exp %37 : vector<8x8xf32>
    %cst_25 = arith.constant dense<0.000000e+00> : vector<8xf32>
    %39 = vector.multi_reduction <add>, %38, %cst_25 [1] : vector<8x8xf32> to vector<8xf32>
    %40 = vector.shape_cast %39 : vector<8xf32> to vector<8x1xf32>
    %cst_26 = arith.constant dense<0.000000e+00> : vector<8x8xf32>
    %41 = tpu.matmul %38, %32, %cst_26 {dimension_numbers = #tpu.dot_dimension_numbers<[1], [0], [0], [1], [0, 0, 1, 1], [], []>} : vector<8x8xf32>, vector<8x8xf32>, vector<8x8xf32> -> vector<8x8xf32>
    %42 = tpu.reciprocal %40 {approx = true} : vector<8x1xf32> -> vector<8x1xf32>
    %43 = vector.broadcast %42 : vector<8x1xf32> to vector<8x8xf32>
    %44 = arith.mulf %41, %43 : vector<8x8xf32>
    %45 = vector.extract_strided_slice %17 {offsets = [0, 8], sizes = [8, 8], strides = [1, 1]} : vector<8x32xf32> to vector<8x8xf32>
    %46 = vector.extract_strided_slice %23 {offsets = [0, 8], sizes = [8, 8], strides = [1, 1]} : vector<8x32xf32> to vector<8x8xf32>
    %47 = vector.extract_strided_slice %29 {offsets = [0, 8], sizes = [8, 8], strides = [1, 1]} : vector<8x32xf32> to vector<8x8xf32>
    %cst_27 = arith.constant dense<0.000000e+00> : vector<8x8xf32>
    %48 = tpu.matmul %45, %46, %cst_27 {dimension_numbers = #tpu.dot_dimension_numbers<[1], [1], [0], [0], [0, 0, 1, 0], [], []>} : vector<8x8xf32>, vector<8x8xf32>, vector<8x8xf32> -> vector<8x8xf32>
    %cst_28 = arith.constant dense<0xFF800000> : vector<8xf32>
    %49 = vector.multi_reduction <maximumf>, %48, %cst_28 [1] : vector<8x8xf32> to vector<8xf32>
    %50 = vector.shape_cast %49 : vector<8xf32> to vector<8x1xf32>
    %51 = vector.broadcast %50 : vector<8x1xf32> to vector<8x8xf32>
    %52 = arith.subf %48, %51 : vector<8x8xf32>
    %53 = math.exp %52 : vector<8x8xf32>
    %cst_29 = arith.constant dense<0.000000e+00> : vector<8xf32>
    %54 = vector.multi_reduction <add>, %53, %cst_29 [1] : vector<8x8xf32> to vector<8xf32>
    %55 = vector.shape_cast %54 : vector<8xf32> to vector<8x1xf32>
    %cst_30 = arith.constant dense<0.000000e+00> : vector<8x8xf32>
    %56 = tpu.matmul %53, %47, %cst_30 {dimension_numbers = #tpu.dot_dimension_numbers<[1], [0], [0], [1], [0, 0, 1, 1], [], []>} : vector<8x8xf32>, vector<8x8xf32>, vector<8x8xf32> -> vector<8x8xf32>
    %57 = tpu.reciprocal %55 {approx = true} : vector<8x1xf32> -> vector<8x1xf32>
    %58 = vector.broadcast %57 : vector<8x1xf32> to vector<8x8xf32>
    %59 = arith.mulf %56, %58 : vector<8x8xf32>
    %60 = vector.extract_strided_slice %17 {offsets = [0, 16], sizes = [8, 8], strides = [1, 1]} : vector<8x32xf32> to vector<8x8xf32>
    %61 = vector.extract_strided_slice %23 {offsets = [0, 16], sizes = [8, 8], strides = [1, 1]} : vector<8x32xf32> to vector<8x8xf32>
    %62 = vector.extract_strided_slice %29 {offsets = [0, 16], sizes = [8, 8], strides = [1, 1]} : vector<8x32xf32> to vector<8x8xf32>
    %cst_31 = arith.constant dense<0.000000e+00> : vector<8x8xf32>
    %63 = tpu.matmul %60, %61, %cst_31 {dimension_numbers = #tpu.dot_dimension_numbers<[1], [1], [0], [0], [0, 0, 1, 0], [], []>} : vector<8x8xf32>, vector<8x8xf32>, vector<8x8xf32> -> vector<8x8xf32>
    %cst_32 = arith.constant dense<0xFF800000> : vector<8xf32>
    %64 = vector.multi_reduction <maximumf>, %63, %cst_32 [1] : vector<8x8xf32> to vector<8xf32>
    %65 = vector.shape_cast %64 : vector<8xf32> to vector<8x1xf32>
    %66 = vector.broadcast %65 : vector<8x1xf32> to vector<8x8xf32>
    %67 = arith.subf %63, %66 : vector<8x8xf32>
    %68 = math.exp %67 : vector<8x8xf32>
    %cst_33 = arith.constant dense<0.000000e+00> : vector<8xf32>
    %69 = vector.multi_reduction <add>, %68, %cst_33 [1] : vector<8x8xf32> to vector<8xf32>
    %70 = vector.shape_cast %69 : vector<8xf32> to vector<8x1xf32>
    %cst_34 = arith.constant dense<0.000000e+00> : vector<8x8xf32>
    %71 = tpu.matmul %68, %62, %cst_34 {dimension_numbers = #tpu.dot_dimension_numbers<[1], [0], [0], [1], [0, 0, 1, 1], [], []>} : vector<8x8xf32>, vector<8x8xf32>, vector<8x8xf32> -> vector<8x8xf32>
    %72 = tpu.reciprocal %70 {approx = true} : vector<8x1xf32> -> vector<8x1xf32>
    %73 = vector.broadcast %72 : vector<8x1xf32> to vector<8x8xf32>
    %74 = arith.mulf %71, %73 : vector<8x8xf32>
    %75 = vector.extract_strided_slice %17 {offsets = [0, 24], sizes = [8, 8], strides = [1, 1]} : vector<8x32xf32> to vector<8x8xf32>
    %76 = vector.extract_strided_slice %23 {offsets = [0, 24], sizes = [8, 8], strides = [1, 1]} : vector<8x32xf32> to vector<8x8xf32>
    %77 = vector.extract_strided_slice %29 {offsets = [0, 24], sizes = [8, 8], strides = [1, 1]} : vector<8x32xf32> to vector<8x8xf32>
    %cst_35 = arith.constant dense<0.000000e+00> : vector<8x8xf32>
    %78 = tpu.matmul %75, %76, %cst_35 {dimension_numbers = #tpu.dot_dimension_numbers<[1], [1], [0], [0], [0, 0, 1, 0], [], []>} : vector<8x8xf32>, vector<8x8xf32>, vector<8x8xf32> -> vector<8x8xf32>
    %cst_36 = arith.constant dense<0xFF800000> : vector<8xf32>
    %79 = vector.multi_reduction <maximumf>, %78, %cst_36 [1] : vector<8x8xf32> to vector<8xf32>
    %80 = vector.shape_cast %79 : vector<8xf32> to vector<8x1xf32>
    %81 = vector.broadcast %80 : vector<8x1xf32> to vector<8x8xf32>
    %82 = arith.subf %78, %81 : vector<8x8xf32>
    %83 = math.exp %82 : vector<8x8xf32>
    %cst_37 = arith.constant dense<0.000000e+00> : vector<8xf32>
    %84 = vector.multi_reduction <add>, %83, %cst_37 [1] : vector<8x8xf32> to vector<8xf32>
    %85 = vector.shape_cast %84 : vector<8xf32> to vector<8x1xf32>
    %cst_38 = arith.constant dense<0.000000e+00> : vector<8x8xf32>
    %86 = tpu.matmul %83, %77, %cst_38 {dimension_numbers = #tpu.dot_dimension_numbers<[1], [0], [0], [1], [0, 0, 1, 1], [], []>} : vector<8x8xf32>, vector<8x8xf32>, vector<8x8xf32> -> vector<8x8xf32>
    %87 = tpu.reciprocal %85 {approx = true} : vector<8x1xf32> -> vector<8x1xf32>
    %88 = vector.broadcast %87 : vector<8x1xf32> to vector<8x8xf32>
    %89 = arith.mulf %86, %88 : vector<8x8xf32>
    %90 = tpu.concatenate %44, %59, %74, %89 in 1 : vector<8x8xf32>, vector<8x8xf32>, vector<8x8xf32>, vector<8x8xf32> -> vector<8x32xf32>
    %c0_39 = arith.constant 0 : index
    %c0_40 = arith.constant 0 : index
    %91 = vector.load %arg11[%c0_39, %c0_40] : memref<8x32xf32, #tpu.memory_space<vmem>>, vector<8x32xf32>
    %c0_41 = arith.constant 0 : index
    %c0_42 = arith.constant 0 : index
    %c0_43 = arith.constant 0 : index
    %92 = vector.load %arg8[%c0_41, %c0_42, %c0_43] : memref<1x32x32xf32, #tpu.memory_space<vmem>>, vector<1x32x32xf32>
    %93 = vector.shape_cast %92 : vector<1x32x32xf32> to vector<32x32xf32>
    %cst_44 = arith.constant dense<0.000000e+00> : vector<8x32xf32>
    %94 = tpu.matmul %90, %93, %cst_44 {dimension_numbers = #tpu.dot_dimension_numbers<[1], [0], [0], [1], [0, 0, 1, 1], [], []>} : vector<8x32xf32>, vector<32x32xf32>, vector<8x32xf32> -> vector<8x32xf32>
    %95 = arith.addf %91, %94 : vector<8x32xf32>
    %c0_45 = arith.constant 0 : index
    %c0_46 = arith.constant 0 : index
    %96 = vector.load %arg11[%c0_45, %c0_46] : memref<8x32xf32, #tpu.memory_space<vmem>>, vector<8x32xf32>
    tpu.vector_store %arg11[%c0_45, %c0_46], %95 {strides = array<i32>} : memref<8x32xf32, #tpu.memory_space<vmem>>, vector<8x32xf32>,
    %c0_i32_47 = arith.constant 0 : i32
    %97 = arith.cmpi eq, %arg2, %c0_i32_47 : i32
    %98 = arith.extui %97 : i1 to i32
    %c0_i32_48 = arith.constant 0 : i32
    %99 = arith.cmpi ne, %98, %c0_i32_48 : i32
    scf.if %99 {
      %c0_49 = arith.constant 0 : index
      %c0_50 = arith.constant 0 : index
      %100 = vector.load %arg11[%c0_49, %c0_50] : memref<8x32xf32, #tpu.memory_space<vmem>>, vector<8x32xf32>
      %c0_51 = arith.constant 0 : index
      %c0_52 = arith.constant 0 : index
      %101 = vector.load %arg9[%c0_51, %c0_52] : memref<1x32xf32, #tpu.memory_space<vmem>>, vector<1x32xf32>
      %102 = vector.broadcast %101 : vector<1x32xf32> to vector<8x32xf32>
      %103 = arith.addf %100, %102 : vector<8x32xf32>
      %c0_53 = arith.constant 0 : index
      %c0_54 = arith.constant 0 : index
      %c0_55 = arith.constant 0 : index
      %104 = vector.load %arg10[%c0_53, %c0_54, %c0_55] : memref<1x8x32xf32, #tpu.memory_space<vmem>>, vector<1x8x32xf32>
      %105 = vector.shape_cast %104 : vector<1x8x32xf32> to vector<8x32xf32>
      %106 = vector.shape_cast %103 : vector<8x32xf32> to vector<1x8x32xf32>
      tpu.vector_store %arg10[%c0_53, %c0_54, %c0_55], %106 {strides = array<i32>} : memref<1x8x32xf32, #tpu.memory_space<vmem>>, vector<1x8x32xf32>,
    } else {
    }
    return
  }
  func.func @transform_0(%arg0: i32, %arg1: i32, %arg2: i32) -> (i32, i32, i32) {
    %c0_i32 = arith.constant 0 : i32
    %c0_i32_0 = arith.constant 0 : i32
    return %arg0, %arg1, %c0_i32 : i32, i32, i32
  }
  func.func @transform_1(%arg0: i32, %arg1: i32, %arg2: i32) -> (i32, i32, i32) {
    %c0_i32 = arith.constant 0 : i32
    %c0_i32_0 = arith.constant 0 : i32
    %c0_i32_1 = arith.constant 0 : i32
    return %arg0, %c0_i32, %c0_i32_0 : i32, i32, i32
  }
  func.func @transform_2(%arg0: i32, %arg1: i32, %arg2: i32) -> (i32, i32, i32) {
    %c0_i32 = arith.constant 0 : i32
    %c0_i32_0 = arith.constant 0 : i32
    %c0_i32_1 = arith.constant 0 : i32
    return %arg0, %c0_i32, %c0_i32_0 : i32, i32, i32
  }
  func.func @transform_3(%arg0: i32, %arg1: i32, %arg2: i32) -> (i32, i32, i32, i32) {
    %c0_i32 = arith.constant 0 : i32
    %c0_i32_0 = arith.constant 0 : i32
    %c0_i32_1 = arith.constant 0 : i32
    %c0_i32_2 = arith.constant 0 : i32
    return %arg2, %c0_i32, %c0_i32_0, %c0_i32_1 : i32, i32, i32, i32
  }
  func.func @transform_4(%arg0: i32, %arg1: i32, %arg2: i32) -> (i32, i32, i32) {
    %c0_i32 = arith.constant 0 : i32
    %c0_i32_0 = arith.constant 0 : i32
    %c0_i32_1 = arith.constant 0 : i32
    %c0_i32_2 = arith.constant 0 : i32
    return %c0_i32, %c0_i32_0, %c0_i32_1 : i32, i32, i32
  }
  func.func @transform_5(%arg0: i32, %arg1: i32, %arg2: i32) -> (i32, i32, i32) {
    %c0_i32 = arith.constant 0 : i32
    %c0_i32_0 = arith.constant 0 : i32
    %c0_i32_1 = arith.constant 0 : i32
    return %arg2, %c0_i32, %c0_i32_0 : i32, i32, i32
  }
  func.func @transform_6(%arg0: i32, %arg1: i32, %arg2: i32) -> (i32, i32) {
    %c0_i32 = arith.constant 0 : i32
    %c0_i32_0 = arith.constant 0 : i32
    %c0_i32_1 = arith.constant 0 : i32
    return %c0_i32, %c0_i32_0 : i32, i32
  }
  func.func @transform_7(%arg0: i32, %arg1: i32, %arg2: i32) -> (i32, i32, i32) {
    %c0_i32 = arith.constant 0 : i32
    %c0_i32_0 = arith.constant 0 : i32
    return %arg0, %arg1, %c0_i32 : i32, i32, i32
  }
}

</mosaic_0001>

<llo_original>
// kernel: tpu_custom_call.1
$region0: #{tpu_custom_call.1}
  #allocation0 [shape = 'u32[]', space=smem, size = 0x4, offset = 0x4, fixed_abs, tag = 'smem constant byte address 0x4 - core index']
  #allocation1 [shape = 'u32[144,128]{1,0:T(1,128)}', space=vmem, size = 0x12000, scoped, tag = 'internal scratch']
  #allocation2 [shape = 'f32[8,32]{1,0:T(8,128)}', space=vmem, size = 0x1000, scoped, tag = 'scratch operand']
  %s0 = inlined_call_operand.hbm [shape: f32[2,8,32], index: 0, kind: input, shape index: {}]
  %s1 = inlined_call_operand.hbm [shape: f32[2,8,32], index: 1, kind: input, shape index: {}]
  %s2 = inlined_call_operand.hbm [shape: f32[2,8,32], index: 2, kind: input, shape index: {}]
  %s3 = inlined_call_operand.hbm [shape: f32[1,3,32,32], index: 3, kind: input, shape index: {}]
  %s4 = inlined_call_operand.vmem [shape: f32[1,3,32], index: 4, kind: input, shape index: {}]
  %s5 = inlined_call_operand.hbm [shape: f32[1,32,32], index: 5, kind: input, shape index: {}]
  %s6 = inlined_call_operand.vmem [shape: f32[1,32], index: 6, kind: input, shape index: {}]
  %s7 = inlined_call_operand.hbm [shape: f32[2,8,32], index: 7, kind: output, shape index: {}]
  %s8 = sld [smem:[#allocation0]]
  $region89: #{tpu_custom_call.1} parent=0
    _
  %s10 = ssub.s32 1, %s8
  %s11 = scalar_select 0, %s10, %s8
  $region1: #{tpu_custom_call.1} parent=0
    #allocation3 [shape = 'u8[8192]{0}', space=vmem, size = 0x2000, scoped, tag = 'input window, operand 0']
    #allocation4 [shape = 's32[2]{0}', space=sflag, size = 0x8, scoped, tag = 'scoped memory for tpu_custom_call.1']
    #allocation5 [shape = 's32[2]{0}', space=sflag, size = 0x8, scoped, tag = 'scoped memory for tpu_custom_call.1']
    #allocation6 [shape = 'u8[8192]{0}', space=vmem, size = 0x2000, scoped, tag = 'input window, operand 1']
    #allocation7 [shape = 's32[2]{0}', space=sflag, size = 0x8, scoped, tag = 'scoped memory for tpu_custom_call.1']
    #allocation8 [shape = 'u8[8192]{0}', space=vmem, size = 0x2000, scoped, tag = 'input window, operand 2']
    #allocation9 [shape = 'u8[49152]{0}', space=vmem, size = 0xc000, scoped, tag = 'input window, operand 3, single buffered']
    #allocation10 [shape = 's32[1]{0}', space=sflag, size = 0x4, scoped, tag = 'scoped memory for tpu_custom_call.1']
    #allocation11 [shape = 'u8[16384]{0}', space=vmem, size = 0x4000, scoped, tag = 'input window, operand 5, single buffered']
    #allocation12 [shape = 'u8[8192]{0}', space=vmem, size = 0x2000, scoped, tag = 'output window, operand 0']
    %12 = vsyncpa [#allocation4], 0
    %s13 = scalar_lea.sflag [#allocation4], 1
    %14 = vsyncpa %s13, 0
    %15 = vsyncpa [#allocation7], 0
    %s16 = scalar_lea.sflag [#allocation7], 1
    %17 = vsyncpa %s16, 0
    %18 = vsyncpa [#allocation10], 0
    %19 = vsyncpa [#allocation5], 0
    %s20 = scalar_lea.sflag [#allocation5], 1
    %21 = vsyncpa %s20, 0
    loop: start=0, step=1, limit=4
    $region2: #{tpu_custom_call.1} parent=1 // loop_pre_header
      _
    $region3: #{tpu_custom_call.1} parent=1 // loop_header
      %s23 = sphi 0, %s27
      %p24 = scmp.ge.s32.totalorder %s23, 4
      %s30 = sphi 0, %s49
      %s31 = sphi 0, %s45
      %s32 = sphi 0, %s41
      %s33 = sphi 0, %s30
      %s34 = sphi 0, %s31
      %s35 = sphi 0, %s32
      %s36 = sphi 0, %s33
      %s37 = sphi 0, %s34
      %s38 = sphi 0, %s35
      %s54 = sphi 0, %s56
      %s57 = sphi 0, %s54
      %s58 = sphi 0, %s57
      %s74 = sphi 0, %s58
      %s80 = sphi 0, %s82
      %s83 = sphi 0, %s80
      %s84 = sphi 0, %s83
      %s100 = sphi 0, %s84
      %s106 = sphi 0, %s108
      %s109 = sphi 0, %s106
      %s110 = sphi 0, %s109
      %s126 = sphi 0, %s110
      %s132 = sphi 0, %s134
      %s135 = sphi 0, %s132
      %s136 = sphi 0, %s135
      %s152 = sphi 0, %s136
      %s156 = sphi 0, %s156
      %s158 = sphi 0, %s156
      %s159 = sphi 0, %s158
      %s173 = sphi 0, %s159
      %s179 = sphi 0, %s181
      %s182 = sphi 0, %s179
      %s183 = sphi 0, %s182
      %s199 = sphi 0, %s183
      %s203 = sphi 0, %s203
      %s205 = sphi 0, %s203
      %s206 = sphi 0, %s205
      %s220 = sphi 0, %s206
      %s228 = sphi 0, %s230
      %s231 = sphi 0, %s228
      %s232 = sphi 0, %s231
      %s248 = sphi 0, %s232
    $region4: #{tpu_custom_call.1} parent=1 // loop_header_branch
      %26 = sbr.rel (%p24) target = $region8
    $region5: #{tpu_custom_call.1} parent=1 // loop_body
      %s28 = ssub.s32 %s23, 1
      %s29 = ssub.s32 %s23, 2
      %s39 = sadd.s32 1, %s32
      %p40 = scmp.ge.s32.totalorder %s39, 1
      %s41 = scalar_select %p40, 0, %s39
      %s42 = sadd.s32 1, %s31
      %s43 = scalar_select %p40, %s42, %s31
      %p44 = scmp.ge.s32.totalorder %s43, 1
      %s45 = scalar_select %p44, 0, %s43
      %s46 = sadd.s32 1, %s30
      %s47 = scalar_select %p44, %s46, %s30
      %p48 = scmp.ge.s32.totalorder %s47, 2
      %s49 = scalar_select %p48, 0, %s47
      %s50 = ssub.s32 %s30, %s49
      %s51 = ssub.s32 %s31, %s45
      %s52 = sor.u32 %s50, %s51
      %p53 = scmp.eq.s32.totalorder %s52, 0
      %s55 = sadd.s32 %s54, 1
      %s56 = scalar_select %p53, %s54, %s55
      %p59 = pneg %p53
      %p60 = scmp.eq.s32.totalorder %s23, 1
      %p61 = por %p59, %p60
      %p62 = scmp.ne.s32.totalorder %s54, %s57
      %p63 = scmp.eq.s32.totalorder %s23, 0
      %p64 = por %p62, %p63
      %p65 = scmp.ne.s32.totalorder %s54, %s57
      %p66 = scmp.eq.s32.totalorder %s28, 1
      %p67 = por %p65, %p66
      %p68 = scmp.ne.s32.totalorder %s57, %s58
      %p69 = scmp.eq.s32.totalorder %s28, 0
      %p70 = por %p68, %p69
      %p71 = scmp.ne.s32.totalorder %s57, %s58
      %p72 = scmp.eq.s32.totalorder %s29, 1
      %p73 = por %p71, %p72
      %p75 = scmp.ne.s32.totalorder %s58, %s74
      %p76 = scmp.eq.s32.totalorder %s29, 0
      %p77 = por %p75, %p76
      %s78 = ssub.s32 %s30, %s49
      %p79 = scmp.eq.s32.totalorder %s78, 0
      %s81 = sadd.s32 %s80, 1
      %s82 = scalar_select %p79, %s80, %s81
      %p85 = pneg %p79
      %p86 = scmp.eq.s32.totalorder %s23, 1
      %p87 = por %p85, %p86
      %p88 = scmp.ne.s32.totalorder %s80, %s83
      %p89 = scmp.eq.s32.totalorder %s23, 0
      %p90 = por %p88, %p89
      %p91 = scmp.ne.s32.totalorder %s80, %s83
      %p92 = scmp.eq.s32.totalorder %s28, 1
      %p93 = por %p91, %p92
      %p94 = scmp.ne.s32.totalorder %s83, %s84
      %p95 = scmp.eq.s32.totalorder %s28, 0
      %p96 = por %p94, %p95
      %p97 = scmp.ne.s32.totalorder %s83, %s84
      %p98 = scmp.eq.s32.totalorder %s29, 1
      %p99 = por %p97, %p98
      %p101 = scmp.ne.s32.totalorder %s84, %s100
      %p102 = scmp.eq.s32.totalorder %s29, 0
      %p103 = por %p101, %p102
      %s104 = ssub.s32 %s30, %s49
      %p105 = scmp.eq.s32.totalorder %s104, 0
      %s107 = sadd.s32 %s106, 1
      %s108 = scalar_select %p105, %s106, %s107
      %p111 = pneg %p105
      %p112 = scmp.eq.s32.totalorder %s23, 1
      %p113 = por %p111, %p112
      %p114 = scmp.ne.s32.totalorder %s106, %s109
      %p115 = scmp.eq.s32.totalorder %s23, 0
      %p116 = por %p114, %p115
      %p117 = scmp.ne.s32.totalorder %s106, %s109
      %p118 = scmp.eq.s32.totalorder %s28, 1
      %p119 = por %p117, %p118
      %p120 = scmp.ne.s32.totalorder %s109, %s110
      %p121 = scmp.eq.s32.totalorder %s28, 0
      %p122 = por %p120, %p121
      %p123 = scmp.ne.s32.totalorder %s109, %s110
      %p124 = scmp.eq.s32.totalorder %s29, 1
      %p125 = por %p123, %p124
      %p127 = scmp.ne.s32.totalorder %s110, %s126
      %p128 = scmp.eq.s32.totalorder %s29, 0
      %p129 = por %p127, %p128
      %s130 = ssub.s32 %s32, %s41
      %p131 = scmp.eq.s32.totalorder %s130, 0
      %s133 = sadd.s32 %s132, 1
      %s134 = scalar_select %p131, %s132, %s133
      %p137 = pneg %p131
      %p138 = scmp.eq.s32.totalorder %s23, 1
      %p139 = por %p137, %p138
      %p140 = scmp.ne.s32.totalorder %s132, %s135
      %p141 = scmp.eq.s32.totalorder %s23, 0
      %p142 = por %p140, %p141
      %p143 = scmp.ne.s32.totalorder %s132, %s135
      %p144 = scmp.eq.s32.totalorder %s28, 1
      %p145 = por %p143, %p144
      %p146 = scmp.ne.s32.totalorder %s135, %s136
      %p147 = scmp.eq.s32.totalorder %s28, 0
      %p148 = por %p146, %p147
      %p149 = scmp.ne.s32.totalorder %s135, %s136
      %p150 = scmp.eq.s32.totalorder %s29, 1
      %p151 = por %p149, %p150
      %p153 = scmp.ne.s32.totalorder %s136, %s152
      %p154 = scmp.eq.s32.totalorder %s29, 0
      %p155 = por %p153, %p154
      %s157 = sadd.s32 %s156, 1
      %p160 = scmp.eq.s32.totalorder %s23, 1
      %p161 = scmp.ne.s32.totalorder %s156, %s158
      %p162 = scmp.eq.s32.totalorder %s23, 0
      %p163 = por %p161, %p162
      %p164 = scmp.ne.s32.totalorder %s156, %s158
      %p165 = scmp.eq.s32.totalorder %s28, 1
      %p166 = por %p164, %p165
      %p167 = scmp.ne.s32.totalorder %s158, %s159
      %p168 = scmp.eq.s32.totalorder %s28, 0
      %p169 = por %p167, %p168
      %p170 = scmp.ne.s32.totalorder %s158, %s159
      %p171 = scmp.eq.s32.totalorder %s29, 1
      %p172 = por %p170, %p171
      %p174 = scmp.ne.s32.totalorder %s159, %s173
      %p175 = scmp.eq.s32.totalorder %s29, 0
      %p176 = por %p174, %p175
      %s177 = ssub.s32 %s32, %s41
      %p178 = scmp.eq.s32.totalorder %s177, 0
      %s180 = sadd.s32 %s179, 1
      %s181 = scalar_select %p178, %s179, %s180
      %p184 = pneg %p178
      %p185 = scmp.eq.s32.totalorder %s23, 1
      %p186 = por %p184, %p185
      %p187 = scmp.ne.s32.totalorder %s179, %s182
      %p188 = scmp.eq.s32.totalorder %s23, 0
      %p189 = por %p187, %p188
      %p190 = scmp.ne.s32.totalorder %s179, %s182
      %p191 = scmp.eq.s32.totalorder %s28, 1
      %p192 = por %p190, %p191
      %p193 = scmp.ne.s32.totalorder %s182, %s183
      %p194 = scmp.eq.s32.totalorder %s28, 0
      %p195 = por %p193, %p194
      %p196 = scmp.ne.s32.totalorder %s182, %s183
      %p197 = scmp.eq.s32.totalorder %s29, 1
      %p198 = por %p196, %p197
      %p200 = scmp.ne.s32.totalorder %s183, %s199
      %p201 = scmp.eq.s32.totalorder %s29, 0
      %p202 = por %p200, %p201
      %s204 = sadd.s32 %s203, 1
      %p207 = scmp.eq.s32.totalorder %s23, 1
      %p208 = scmp.ne.s32.totalorder %s203, %s205
      %p209 = scmp.eq.s32.totalorder %s23, 0
      %p210 = por %p208, %p209
      %p211 = scmp.ne.s32.totalorder %s203, %s205
      %p212 = scmp.eq.s32.totalorder %s28, 1
      %p213 = por %p211, %p212
      %p214 = scmp.ne.s32.totalorder %s205, %s206
      %p215 = scmp.eq.s32.totalorder %s28, 0
      %p216 = por %p214, %p215
      %p217 = scmp.ne.s32.totalorder %s205, %s206
      %p218 = scmp.eq.s32.totalorder %s29, 1
      %p219 = por %p217, %p218
      %p221 = scmp.ne.s32.totalorder %s206, %s220
      %p222 = scmp.eq.s32.totalorder %s29, 0
      %p223 = por %p221, %p222
      %s224 = ssub.s32 %s30, %s49
      %s225 = ssub.s32 %s31, %s45
      %s226 = sor.u32 %s224, %s225
      %p227 = scmp.eq.s32.totalorder %s226, 0
      %s229 = sadd.s32 %s228, 1
      %s230 = scalar_select %p227, %s228, %s229
      %p233 = pneg %p227
      %p234 = scmp.eq.s32.totalorder %s23, 1
      %p235 = por %p233, %p234
      %p236 = scmp.ne.s32.totalorder %s228, %s231
      %p237 = scmp.eq.s32.totalorder %s23, 0
      %p238 = por %p236, %p237
      %p239 = scmp.ne.s32.totalorder %s228, %s231
      %p240 = scmp.eq.s32.totalorder %s28, 1
      %p241 = por %p239, %p240
      %p242 = scmp.ne.s32.totalorder %s231, %s232
      %p243 = scmp.eq.s32.totalorder %s28, 0
      %p244 = por %p242, %p243
      %p245 = scmp.ne.s32.totalorder %s231, %s232
      %p246 = scmp.eq.s32.totalorder %s29, 1
      %p247 = por %p245, %p246
      %p249 = scmp.ne.s32.totalorder %s232, %s248
      %p250 = scmp.eq.s32.totalorder %s29, 0
      %p251 = por %p249, %p250
      %p252 = scmp.le.s32.totalorder 1, %s23
      %p253 = scmp.lt.s32.totalorder %s23, 3
      %p254 = pnand %p252, %p253
      %p255 = pneg %p254
      // Predicated region
      $region9: #{tpu_custom_call.1} parent=5 // pred_check
        _
      $region10: #{tpu_custom_call.1} parent=5 // pred_check_branch
        %257 = sbr.rel (%p254) target = $region12
      $region11: #{tpu_custom_call.1} parent=5 // pred_region
        %s258 = ssub.s32 %s23, 1
        // Predicated region
        $region13: #{tpu_custom_call.1} parent=11 // pred_check
          %p259 = pneg %p148
        $region14: #{tpu_custom_call.1} parent=11 // pred_check_branch
          %261 = sbr.rel (%p259) target = $region16
        $region15: #{tpu_custom_call.1} parent=11 // pred_region
          %s263 = ssub.s32 1536, 1536
          %264 = vsyncadd [#allocation10], %s263
          %s265 = smul.addr %s35, 12
          %s266 = smul.addr %s265, 128
          %s267 = scalar_lea.hbm %s3, %s266
          %s268 = sshll.u32 [#allocation9], 4
          %s269 = int_to_ptr.vmem [resolvable:$true] %s268
          %274 = dma.hbm_to_vmem [thread:$0]  %s267, 1536, %s269, [#allocation10], 128, 128, 8
        $region16: #{tpu_custom_call.1} parent=11 // pred_fallthru
          _
        // Predicated region
        $region17: #{tpu_custom_call.1} parent=11 // pred_check
          %p275 = pneg %p169
        $region18: #{tpu_custom_call.1} parent=11 // pred_check_branch
          %277 = sbr.rel (%p275) target = $region20
        $region19: #{tpu_custom_call.1} parent=11 // pred_region
          _
        $region20: #{tpu_custom_call.1} parent=11 // pred_fallthru
          _
        // Predicated region
        $region21: #{tpu_custom_call.1} parent=11 // pred_check
          %p278 = pneg %p195
        $region22: #{tpu_custom_call.1} parent=11 // pred_check_branch
          %280 = sbr.rel (%p278) target = $region24
        $region23: #{tpu_custom_call.1} parent=11 // pred_region
          %s282 = ssub.s32 512, 512
          %283 = vsyncadd [#allocation10], %s282
          %s284 = smul.addr %s35, 4
          %s285 = smul.addr %s284, 128
          %s286 = scalar_lea.hbm %s5, %s285
          %s287 = sshll.u32 [#allocation11], 4
          %s288 = int_to_ptr.vmem [resolvable:$true] %s287
          %293 = dma.hbm_to_vmem [thread:$0]  %s286, 512, %s288, [#allocation10], 128, 128, 8
        $region24: #{tpu_custom_call.1} parent=11 // pred_fallthru
          _
        // Predicated region
        $region25: #{tpu_custom_call.1} parent=11 // pred_check
          %p294 = pneg %p216
        $region26: #{tpu_custom_call.1} parent=11 // pred_check_branch
          %296 = sbr.rel (%p294) target = $region28
        $region27: #{tpu_custom_call.1} parent=11 // pred_region
          _
        $region28: #{tpu_custom_call.1} parent=11 // pred_fallthru
          _
      $region12: #{tpu_custom_call.1} parent=5 // pred_fallthru
        _
      %p297 = scmp.lt.s32.totalorder %s23, 2
      // Predicated region
      $region29: #{tpu_custom_call.1} parent=5 // pred_check
        %p298 = pneg %p297
      $region30: #{tpu_custom_call.1} parent=5 // pred_check_branch
        %300 = sbr.rel (%p298) target = $region32
      $region31: #{tpu_custom_call.1} parent=5 // pred_region
        // Predicated region
        $region33: #{tpu_custom_call.1} parent=31 // pred_check
          %p301 = pneg %p64
        $region34: #{tpu_custom_call.1} parent=31 // pred_check_branch
          %303 = sbr.rel (%p301) target = $region36
        $region35: #{tpu_custom_call.1} parent=31 // pred_region
          %s304 = sand.u32 %s54, 1
          %s305 = scalar_lea.sflag [#allocation4], %s304
          %s306 = sand.u32 %s54, 1
          %s307 = smul.addr %s306, 8
          %s308 = scalar_lea.vmem [#allocation3], %s307
          %s310 = ssub.s32 128, 128
          %311 = vsyncadd %s305, %s310
          %s312 = sadd.s32 %s31, %s30
          %s313 = smul.addr %s312, 128
          %s314 = scalar_lea.hbm %s0, %s313
          %s316 = sshll.u32 %s308, 4
          %s317 = int_to_ptr.vmem [resolvable:$true] %s316
          %319 = dma.hbm_to_vmem [thread:$0]  %s314, 128, %s317, %s305
        $region36: #{tpu_custom_call.1} parent=31 // pred_fallthru
          _
        // Predicated region
        $region37: #{tpu_custom_call.1} parent=31 // pred_check
          %p320 = pneg %p90
        $region38: #{tpu_custom_call.1} parent=31 // pred_check_branch
          %322 = sbr.rel (%p320) target = $region40
        $region39: #{tpu_custom_call.1} parent=31 // pred_region
          %s323 = sand.u32 %s23, 1
          %s324 = scalar_lea.sflag [#allocation7], %s323
          %s325 = sand.u32 %s80, 1
          %s326 = smul.addr %s325, 8
          %s327 = scalar_lea.vmem [#allocation6], %s326
          %s329 = ssub.s32 128, 128
          %330 = vsyncadd %s324, %s329
          %s331 = smul.addr %s30, 128
          %s332 = scalar_lea.hbm %s1, %s331
          %s334 = sshll.u32 %s327, 4
          %s335 = int_to_ptr.vmem [resolvable:$true] %s334
          %337 = dma.hbm_to_vmem [thread:$0]  %s332, 128, %s335, %s324
        $region40: #{tpu_custom_call.1} parent=31 // pred_fallthru
          _
        // Predicated region
        $region41: #{tpu_custom_call.1} parent=31 // pred_check
          %p338 = pneg %p116
        $region42: #{tpu_custom_call.1} parent=31 // pred_check_branch
          %340 = sbr.rel (%p338) target = $region44
        $region43: #{tpu_custom_call.1} parent=31 // pred_region
          %s341 = sand.u32 %s23, 1
          %s342 = scalar_lea.sflag [#allocation7], %s341
          %s343 = sand.u32 %s106, 1
          %s344 = smul.addr %s343, 8
          %s345 = scalar_lea.vmem [#allocation8], %s344
          %s347 = ssub.s32 128, 128
          %348 = vsyncadd %s342, %s347
          %s349 = smul.addr %s30, 128
          %s350 = scalar_lea.hbm %s2, %s349
          %s352 = sshll.u32 %s345, 4
          %s353 = int_to_ptr.vmem [resolvable:$true] %s352
          %355 = dma.hbm_to_vmem [thread:$0]  %s350, 128, %s353, %s342
        $region44: #{tpu_custom_call.1} parent=31 // pred_fallthru
          _
      $region32: #{tpu_custom_call.1} parent=5 // pred_fallthru
        _
      %p356 = scmp.le.s32.totalorder 1, %s23
      %p357 = scmp.lt.s32.totalorder %s23, 3
      %p358 = pnand %p356, %p357
      %p359 = pneg %p358
      // Predicated region
      $region45: #{tpu_custom_call.1} parent=5 // pred_check
        _
      $region46: #{tpu_custom_call.1} parent=5 // pred_check_branch
        %361 = sbr.rel (%p358) target = $region48
      $region47: #{tpu_custom_call.1} parent=5 // pred_region
        %s362 = ssub.s32 %s23, 1
        %s363 = sand.u32 %s57, 1
        %s364 = scalar_lea.sflag [#allocation4], %s363
        %s365 = sand.u32 %s57, 1
        %s366 = smul.addr %s365, 8
        %s367 = scalar_lea.vmem [#allocation3], %s366
        // Predicated region
        $region49: #{tpu_custom_call.1} parent=47 // pred_check
          %p368 = pneg %p70
        $region50: #{tpu_custom_call.1} parent=47 // pred_check_branch
          %370 = sbr.rel (%p368) target = $region52
        $region51: #{tpu_custom_call.1} parent=47 // pred_region
          %371 = dma.done %s364, 128
        $region52: #{tpu_custom_call.1} parent=47 // pred_fallthru
          _
        %s372 = sand.u32 %s28, 1
        %s373 = scalar_lea.sflag [#allocation7], %s372
        %s374 = sand.u32 %s83, 1
        %s375 = smul.addr %s374, 8
        %s376 = scalar_lea.vmem [#allocation6], %s375
        // Predicated region
        $region53: #{tpu_custom_call.1} parent=47 // pred_check
          %p377 = pneg %p96
        $region54: #{tpu_custom_call.1} parent=47 // pred_check_branch
          %379 = sbr.rel (%p377) target = $region56
        $region55: #{tpu_custom_call.1} parent=47 // pred_region
          %380 = dma.done %s373, 128
        $region56: #{tpu_custom_call.1} parent=47 // pred_fallthru
          _
        %s381 = sand.u32 %s28, 1
        %s382 = scalar_lea.sflag [#allocation7], %s381
        %s383 = sand.u32 %s109, 1
        %s384 = smul.addr %s383, 8
        %s385 = scalar_lea.vmem [#allocation8], %s384
        // Predicated region
        $region57: #{tpu_custom_call.1} parent=47 // pred_check
          %p386 = pneg %p122
        $region58: #{tpu_custom_call.1} parent=47 // pred_check_branch
          %388 = sbr.rel (%p386) target = $region60
        $region59: #{tpu_custom_call.1} parent=47 // pred_region
          %389 = dma.done %s382, 128
        $region60: #{tpu_custom_call.1} parent=47 // pred_fallthru
          _
        // Predicated region
        $region61: #{tpu_custom_call.1} parent=47 // pred_check
          %p390 = pneg %p148
        $region62: #{tpu_custom_call.1} parent=47 // pred_check_branch
          %392 = sbr.rel (%p390) target = $region64
        $region63: #{tpu_custom_call.1} parent=47 // pred_region
          %393 = dma.done [#allocation10], 1536
        $region64: #{tpu_custom_call.1} parent=47 // pred_fallthru
          _
        // Predicated region
        $region65: #{tpu_custom_call.1} parent=47 // pred_check
          %p394 = pneg %p195
        $region66: #{tpu_custom_call.1} parent=47 // pred_check_branch
          %396 = sbr.rel (%p394) target = $region68
        $region67: #{tpu_custom_call.1} parent=47 // pred_region
          %397 = dma.done [#allocation10], 512
        $region68: #{tpu_custom_call.1} parent=47 // pred_fallthru
          _
        %s398 = sand.u32 %s57, 1
        %s399 = scalar_lea.sflag [#allocation4], %s398
        %s400 = sand.u32 %s57, 1
        %s401 = smul.addr %s400, 8
        %s402 = scalar_lea.vmem [#allocation3], %s401
        %p403 = pneg %p70
        %p404 = pneg %p67
        %s405 = sand.u32 %s28, 1
        %s406 = scalar_lea.sflag [#allocation7], %s405
        %s407 = sand.u32 %s83, 1
        %s408 = smul.addr %s407, 8
        %s409 = scalar_lea.vmem [#allocation6], %s408
        %p410 = pneg %p96
        %p411 = pneg %p93
        %s412 = sand.u32 %s28, 1
        %s413 = scalar_lea.sflag [#allocation7], %s412
        %s414 = sand.u32 %s109, 1
        %s415 = smul.addr %s414, 8
        %s416 = scalar_lea.vmem [#allocation8], %s415
        %p417 = pneg %p122
        %p418 = pneg %p119
        %p419 = pneg %p148
        %p420 = pneg %p145
        %p421 = pneg %p169
        %p422 = pneg %p166
        %p423 = pneg %p195
        %p424 = pneg %p192
        %p425 = pneg %p216
        %p426 = pneg %p213
        %p427 = pneg %p244
        %p428 = pneg %p241
        %s429 = sand.u32 %s231, 1
        %s430 = scalar_lea.sflag [#allocation5], %s429
        %s431 = sand.u32 %s231, 1
        %s432 = smul.addr %s431, 8
        %s433 = scalar_lea.vmem [#allocation12], %s432
        %p434 = scmp.eq.s32.totalorder %s35, 0
        // Predicated region
        $region69: #{tpu_custom_call.1} parent=47 // pred_check
          %p435 = pneg %p434
        $region70: #{tpu_custom_call.1} parent=47 // pred_check_branch
          %437 = sbr.rel (%p435) target = $region72
        $region71: #{tpu_custom_call.1} parent=47 // pred_region
          %vm438 = vcmask 261120
          %439 = vst.msk [vmem:[#allocation2] sm:$0xff] %vm438, 0.0
        $region72: #{tpu_custom_call.1} parent=47 // pred_fallthru
          _
        %v440 = vld [vmem:[%s367] sm:$0xff]
        %v441 = vld [vmem:[%s376] sm:$0xff]
        %v442 = vld [vmem:[%s385] sm:$0xff]
        %s443 = smul.u32 %s35, 4
        %s444 = scalar_lea.vmem %s4, %s443
        %v445 = vld [vmem:[%s444] sm:$0x7]
        %v446 = vld [vmem:[#allocation9] sm:$0xff]
        %v447 = vld [vmem:[#allocation9 + $0x8] sm:$0xff]
        %v448 = vld [vmem:[#allocation9 + $0x10] sm:$0xff]
        %v449 = vld [vmem:[#allocation9 + $0x18] sm:$0xff]
        %v450 = vlaneseq
        %v451 = vshrl.u32 %v450, 7
        %v452 = vsub.s32 0, %v451
        %v453 = vrot.slane %v445, %v452
        %vm454 = vcmask 261120
        %v456 = vsel %vm454, %v440, 0
        %458 = vmatprep.subr.mxu0 0.0
        %459 = vmatpush1.msra.mxu0 %v446
        %460 = vmatprep.subr.mxu0 0.0
        %461 = vmatpush1.msra.mxu0 %v447
        %462 = vmatprep.subr.mxu0 0.0
        %463 = vmatpush1.msra.mxu0 %v448
        %464 = vmatprep.subr.mxu0 0.0
        %465 = vmatpush1.msra.mxu0 %v449
        %466 = vmatprep.subr.mxu0 0.0
        %467 = vmatpush1.msra.mxu0 0.0
        %468 = vmatprep.subr.mxu0 0.0
        %469 = vmatpush1.msra.mxu0 0.0
        %470 = vmatprep.subr.mxu0 0.0
        %471 = vmatpush1.msra.mxu0 0.0
        %472 = vmatprep.subr.mxu0 0.0
        %473 = vmatpush1.msra.mxu0 0.0
        %474 = vmatprep.subr.mxu0 0.0
        %475 = vmatpush1.msra.mxu0 0.0
        %476 = vmatprep.subr.mxu0 0.0
        %477 = vmatpush1.msra.mxu0 0.0
        %478 = vmatprep.subr.mxu0 0.0
        %479 = vmatpush1.msra.mxu0 0.0
        %480 = vmatprep.subr.mxu0 0.0
        %481 = vmatpush1.msra.mxu0 0.0
        %482 = vmatprep.subr.mxu0 0.0
        %483 = vmatpush1.msra.mxu0 0.0
        %484 = vmatprep.subr.mxu0 0.0
        %485 = vmatpush1.msra.mxu0 0.0
        %486 = vmatprep.subr.mxu0 0.0
        %487 = vmatpush1.msra.mxu0 0.0
        %488 = vmatprep.subr.mxu0 0.0
        %489 = vmatpush1.msra.mxu0 0.0
        %490 = vmatprep.subr.mxu0 0.0
        %491 = vmatpush1.msra.mxu0 0.0
        %492 = vmatprep.subr.mxu0 0.0
        %493 = vmatpush1.msra.mxu0 0.0
        %494 = vmatprep.subr.mxu0 0.0
        %495 = vmatpush1.msra.mxu0 0.0
        %496 = vmatprep.subr.mxu0 0.0
        %497 = vmatpush1.msra.mxu0 0.0
        %498 = vmatprep.subr.mxu0 0.0
        %499 = vmatpush1.msra.mxu0 0.0
        %500 = vmatprep.subr.mxu0 0.0
        %501 = vmatpush1.msra.mxu0 0.0
        %502 = vmatprep.subr.mxu0 0.0
        %503 = vmatpush1.msra.mxu0 0.0
        %504 = vmatprep.subr.mxu0 0.0
        %505 = vmatpush1.msra.mxu0 0.0
        %506 = vmatprep.subr.mxu0 0.0
        %507 = vmatpush1.msra.mxu0 0.0
        %508 = vmatprep.subr.mxu0 0.0
        %509 = vmatpush1.msra.mxu0 0.0
        %510 = vmatprep.subr.mxu0 0.0
        %511 = vmatpush1.msra.mxu0 0.0
        %512 = vmatprep.subr.mxu0 0.0
        %513 = vmatpush1.msra.mxu0 0.0
        %514 = vmatprep.subr.mxu0 0.0
        %515 = vmatpush1.msra.mxu0 0.0
        %516 = vmatprep.subr.mxu0 0.0
        %517 = vmatpush1.msra.mxu0 0.0
        %518 = vmatprep.subr.mxu0 0.0
        %519 = vmatpush1.msra.mxu0 0.0
        %520 = vmatprep.subr.mxu0 0.0
        %521 = vmatpush1.msra.mxu0 0.0
        %522 = vmatprep.mubr.f32.mxu0 0.0
        %523 = vmatmul.mubr.f32.gmra.mrb[0].mxu0 %v456
        %v524 = vpop.f32.mrb[0].mxu0
        %v525 = vadd.f32 %v453, %v524
        %v526 = vpop.f32.mrb[0].mxu0
        %527 = vdwg.mxu0
        %s528 = scalar_lea.vmem [#allocation9], 32
        %v529 = vld [vmem:[%s528] sm:$0xff]
        %v530 = vld [vmem:[%s528 + $0x8] sm:$0xff]
        %v531 = vld [vmem:[%s528 + $0x10] sm:$0xff]
        %v532 = vld [vmem:[%s528 + $0x18] sm:$0xff]
        %v533 = vlaneseq
        %v534 = vshrl.u32 %v533, 7
        %v535 = vsub.s32 1, %v534
        %v536 = vrot.slane %v445, %v535
        %v538 = vsel %vm454, %v441, 0
        %540 = vmatprep.subr.mxu0 0.0
        %541 = vmatpush1.msra.mxu0 %v529
        %542 = vmatprep.subr.mxu0 0.0
        %543 = vmatpush1.msra.mxu0 %v530
        %544 = vmatprep.subr.mxu0 0.0
        %545 = vmatpush1.msra.mxu0 %v531
        %546 = vmatprep.subr.mxu0 0.0
        %547 = vmatpush1.msra.mxu0 %v532
        %548 = vmatprep.subr.mxu0 0.0
        %549 = vmatpush1.msra.mxu0 0.0
        %550 = vmatprep.subr.mxu0 0.0
        %551 = vmatpush1.msra.mxu0 0.0
        %552 = vmatprep.subr.mxu0 0.0
        %553 = vmatpush1.msra.mxu0 0.0
        %554 = vmatprep.subr.mxu0 0.0
        %555 = vmatpush1.msra.mxu0 0.0
        %556 = vmatprep.subr.mxu0 0.0
        %557 = vmatpush1.msra.mxu0 0.0
        %558 = vmatprep.subr.mxu0 0.0
        %559 = vmatpush1.msra.mxu0 0.0
        %560 = vmatprep.subr.mxu0 0.0
        %561 = vmatpush1.msra.mxu0 0.0
        %562 = vmatprep.subr.mxu0 0.0
        %563 = vmatpush1.msra.mxu0 0.0
        %564 = vmatprep.subr.mxu0 0.0
        %565 = vmatpush1.msra.mxu0 0.0
        %566 = vmatprep.subr.mxu0 0.0
        %567 = vmatpush1.msra.mxu0 0.0
        %568 = vmatprep.subr.mxu0 0.0
        %569 = vmatpush1.msra.mxu0 0.0
        %570 = vmatprep.subr.mxu0 0.0
        %571 = vmatpush1.msra.mxu0 0.0
        %572 = vmatprep.subr.mxu0 0.0
        %573 = vmatpush1.msra.mxu0 0.0
        %574 = vmatprep.subr.mxu0 0.0
        %575 = vmatpush1.msra.mxu0 0.0
        %576 = vmatprep.subr.mxu0 0.0
        %577 = vmatpush1.msra.mxu0 0.0
        %578 = vmatprep.subr.mxu0 0.0
        %579 = vmatpush1.msra.mxu0 0.0
        %580 = vmatprep.subr.mxu0 0.0
        %581 = vmatpush1.msra.mxu0 0.0
        %582 = vmatprep.subr.mxu0 0.0
        %583 = vmatpush1.msra.mxu0 0.0
        %584 = vmatprep.subr.mxu0 0.0
        %585 = vmatpush1.msra.mxu0 0.0
        %586 = vmatprep.subr.mxu0 0.0
        %587 = vmatpush1.msra.mxu0 0.0
        %588 = vmatprep.subr.mxu0 0.0
        %589 = vmatpush1.msra.mxu0 0.0
        %590 = vmatprep.subr.mxu0 0.0
        %591 = vmatpush1.msra.mxu0 0.0
        %592 = vmatprep.subr.mxu0 0.0
        %593 = vmatpush1.msra.mxu0 0.0
        %594 = vmatprep.subr.mxu0 0.0
        %595 = vmatpush1.msra.mxu0 0.0
        %596 = vmatprep.subr.mxu0 0.0
        %597 = vmatpush1.msra.mxu0 0.0
        %598 = vmatprep.subr.mxu0 0.0
        %599 = vmatpush1.msra.mxu0 0.0
        %600 = vmatprep.subr.mxu0 0.0
        %601 = vmatpush1.msra.mxu0 0.0
        %602 = vmatprep.subr.mxu0 0.0
        %603 = vmatpush1.msra.mxu0 0.0
        %604 = vmatprep.mubr.f32.mxu0 0.0
        %605 = vmatmul.mubr.f32.gmra.mrb[0].mxu0 %v538
        %v606 = vpop.f32.mrb[0].mxu0
        %v607 = vadd.f32 %v536, %v606
        %v608 = vpop.f32.mrb[0].mxu0
        %609 = vdwg.mxu0
        %s610 = scalar_lea.vmem [#allocation9], 64
        %v611 = vld [vmem:[%s610] sm:$0xff]
        %v612 = vld [vmem:[%s610 + $0x8] sm:$0xff]
        %v613 = vld [vmem:[%s610 + $0x10] sm:$0xff]
        %v614 = vld [vmem:[%s610 + $0x18] sm:$0xff]
        %v615 = vlaneseq
        %v616 = vshrl.u32 %v615, 7
        %v617 = vsub.s32 2, %v616
        %v618 = vrot.slane %v445, %v617
        %v620 = vsel %vm454, %v442, 0
        %622 = vmatprep.subr.mxu0 0.0
        %623 = vmatpush1.msra.mxu0 %v611
        %624 = vmatprep.subr.mxu0 0.0
        %625 = vmatpush1.msra.mxu0 %v612
        %626 = vmatprep.subr.mxu0 0.0
        %627 = vmatpush1.msra.mxu0 %v613
        %628 = vmatprep.subr.mxu0 0.0
        %629 = vmatpush1.msra.mxu0 %v614
        %630 = vmatprep.subr.mxu0 0.0
        %631 = vmatpush1.msra.mxu0 0.0
        %632 = vmatprep.subr.mxu0 0.0
        %633 = vmatpush1.msra.mxu0 0.0
        %634 = vmatprep.subr.mxu0 0.0
        %635 = vmatpush1.msra.mxu0 0.0
        %636 = vmatprep.subr.mxu0 0.0
        %637 = vmatpush1.msra.mxu0 0.0
        %638 = vmatprep.subr.mxu0 0.0
        %639 = vmatpush1.msra.mxu0 0.0
        %640 = vmatprep.subr.mxu0 0.0
        %641 = vmatpush1.msra.mxu0 0.0
        %642 = vmatprep.subr.mxu0 0.0
        %643 = vmatpush1.msra.mxu0 0.0
        %644 = vmatprep.subr.mxu0 0.0
        %645 = vmatpush1.msra.mxu0 0.0
        %646 = vmatprep.subr.mxu0 0.0
        %647 = vmatpush1.msra.mxu0 0.0
        %648 = vmatprep.subr.mxu0 0.0
        %649 = vmatpush1.msra.mxu0 0.0
        %650 = vmatprep.subr.mxu0 0.0
        %651 = vmatpush1.msra.mxu0 0.0
        %652 = vmatprep.subr.mxu0 0.0
        %653 = vmatpush1.msra.mxu0 0.0
        %654 = vmatprep.subr.mxu0 0.0
        %655 = vmatpush1.msra.mxu0 0.0
        %656 = vmatprep.subr.mxu0 0.0
        %657 = vmatpush1.msra.mxu0 0.0
        %658 = vmatprep.subr.mxu0 0.0
        %659 = vmatpush1.msra.mxu0 0.0
        %660 = vmatprep.subr.mxu0 0.0
        %661 = vmatpush1.msra.mxu0 0.0
        %662 = vmatprep.subr.mxu0 0.0
        %663 = vmatpush1.msra.mxu0 0.0
        %664 = vmatprep.subr.mxu0 0.0
        %665 = vmatpush1.msra.mxu0 0.0
        %666 = vmatprep.subr.mxu0 0.0
        %667 = vmatpush1.msra.mxu0 0.0
        %668 = vmatprep.subr.mxu0 0.0
        %669 = vmatpush1.msra.mxu0 0.0
        %670 = vmatprep.subr.mxu0 0.0
        %671 = vmatpush1.msra.mxu0 0.0
        %672 = vmatprep.subr.mxu0 0.0
        %673 = vmatpush1.msra.mxu0 0.0
        %674 = vmatprep.subr.mxu0 0.0
        %675 = vmatpush1.msra.mxu0 0.0
        %676 = vmatprep.subr.mxu0 0.0
        %677 = vmatpush1.msra.mxu0 0.0
        %678 = vmatprep.subr.mxu0 0.0
        %679 = vmatpush1.msra.mxu0 0.0
        %680 = vmatprep.subr.mxu0 0.0
        %681 = vmatpush1.msra.mxu0 0.0
        %682 = vmatprep.subr.mxu0 0.0
        %683 = vmatpush1.msra.mxu0 0.0
        %684 = vmatprep.subr.mxu0 0.0
        %685 = vmatpush1.msra.mxu0 0.0
        %686 = vmatprep.mubr.f32.mxu0 0.0
        %687 = vmatmul.mubr.f32.gmra.mrb[0].mxu0 %v620
        %v688 = vpop.f32.mrb[0].mxu0
        %v689 = vadd.f32 %v618, %v688
        %v690 = vpop.f32.mrb[0].mxu0
        %691 = vdwg.mxu0
        %vm692 = vcmask 64512
        %v694 = vsel %vm692, %v525, 0
        %v697 = vsel %vm692, %v607, 0
        %699 = vmatprep.subr.mxu0 0.0
        %700 = vmatpush1.xpose.msra.mxu0 %v697
        %701 = vmatprep.subr.mxu0 0.0
        %702 = vmatpush1.xpose.msra.mxu0 0.0
        %703 = vmatprep.subr.mxu0 0.0
        %704 = vmatpush1.xpose.msra.mxu0 0.0
        %705 = vmatprep.subr.mxu0 0.0
        %706 = vmatpush1.xpose.msra.mxu0 0.0
        %707 = vmatprep.subr.mxu0 0.0
        %708 = vmatpush1.xpose.msra.mxu0 0.0
        %709 = vmatprep.subr.mxu0 0.0
        %710 = vmatpush1.xpose.msra.mxu0 0.0
        %711 = vmatprep.subr.mxu0 0.0
        %712 = vmatpush1.xpose.msra.mxu0 0.0
        %713 = vmatprep.subr.mxu0 0.0
        %714 = vmatpush1.xpose.msra.mxu0 0.0
        %715 = vmatprep.subr.mxu0 0.0
        %716 = vmatpush1.xpose.msra.mxu0 0.0
        %717 = vmatprep.subr.mxu0 0.0
        %718 = vmatpush1.xpose.msra.mxu0 0.0
        %719 = vmatprep.subr.mxu0 0.0
        %720 = vmatpush1.xpose.msra.mxu0 0.0
        %721 = vmatprep.subr.mxu0 0.0
        %722 = vmatpush1.xpose.msra.mxu0 0.0
        %723 = vmatprep.subr.mxu0 0.0
        %724 = vmatpush1.xpose.msra.mxu0 0.0
        %725 = vmatprep.subr.mxu0 0.0
        %726 = vmatpush1.xpose.msra.mxu0 0.0
        %727 = vmatprep.subr.mxu0 0.0
        %728 = vmatpush1.xpose.msra.mxu0 0.0
        %729 = vmatprep.subr.mxu0 0.0
        %730 = vmatpush1.xpose.msra.mxu0 0.0
        %731 = vmatprep.subr.mxu0 0.0
        %732 = vmatpush1.xpose.msra.mxu0 0.0
        %733 = vmatprep.subr.mxu0 0.0
        %734 = vmatpush1.xpose.msra.mxu0 0.0
        %735 = vmatprep.subr.mxu0 0.0
        %736 = vmatpush1.xpose.msra.mxu0 0.0
        %737 = vmatprep.subr.mxu0 0.0
        %738 = vmatpush1.xpose.msra.mxu0 0.0
        %739 = vmatprep.subr.mxu0 0.0
        %740 = vmatpush1.xpose.msra.mxu0 0.0
        %741 = vmatprep.subr.mxu0 0.0
        %742 = vmatpush1.xpose.msra.mxu0 0.0
        %743 = vmatprep.subr.mxu0 0.0
        %744 = vmatpush1.xpose.msra.mxu0 0.0
        %745 = vmatprep.subr.mxu0 0.0
        %746 = vmatpush1.xpose.msra.mxu0 0.0
        %747 = vmatprep.subr.mxu0 0.0
        %748 = vmatpush1.xpose.msra.mxu0 0.0
        %749 = vmatprep.subr.mxu0 0.0
        %750 = vmatpush1.xpose.msra.mxu0 0.0
        %751 = vmatprep.subr.mxu0 0.0
        %752 = vmatpush1.xpose.msra.mxu0 0.0
        %753 = vmatprep.subr.mxu0 0.0
        %754 = vmatpush1.xpose.msra.mxu0 0.0
        %755 = vmatprep.subr.mxu0 0.0
        %756 = vmatpush1.xpose.msra.mxu0 0.0
        %757 = vmatprep.subr.mxu0 0.0
        %758 = vmatpush1.xpose.msra.mxu0 0.0
        %759 = vmatprep.subr.mxu0 0.0
        %760 = vmatpush1.xpose.msra.mxu0 0.0
        %761 = vmatprep.subr.mxu0 0.0
        %762 = vmatpush1.xpose.msra.mxu0 0.0
        %763 = vmatprep.mubr.f32.mxu0 0.0
        %764 = vmatmul.mubr.f32.gmra.mrb[0].mxu0 %v694
        %v765 = vpop.f32.mrb[0].mxu0
        %v766 = vadd.f32 0.0, %v765
        %v767 = vpop.f32.mrb[0].mxu0
        %768 = vdwg.mxu0
        %v769 = vsel %vm692, %v766, -inf
        %770 = vmax.xlane.f32.xlu0 %v769
        %v771 = vpop.xlane.xlu0 %770
        %v772 = vsub.f32 %v766, %v771
        %v773 = vmul.f32 %v772, 1.442695
        %v774 = vpow.pop %v773
        %v775 = vsel %vm692, %v774, 0.0
        %776 = vadd.xlane.f32.xlu0 %v775
        %v777 = vpop.xlane.xlu0 %776
        %v779 = vsel %vm692, %v774, 0
        %781 = vmatprep.subr.mxu0 0.0
        %782 = vmatpush1.msra.mxu0 %v689
        %783 = vmatprep.subr.mxu0 0.0
        %784 = vmatpush1.msra.mxu0 0.0
        %785 = vmatprep.subr.mxu0 0.0
        %786 = vmatpush1.msra.mxu0 0.0
        %787 = vmatprep.subr.mxu0 0.0
        %788 = vmatpush1.msra.mxu0 0.0
        %789 = vmatprep.subr.mxu0 0.0
        %790 = vmatpush1.msra.mxu0 0.0
        %791 = vmatprep.subr.mxu0 0.0
        %792 = vmatpush1.msra.mxu0 0.0
        %793 = vmatprep.subr.mxu0 0.0
        %794 = vmatpush1.msra.mxu0 0.0
        %795 = vmatprep.subr.mxu0 0.0
        %796 = vmatpush1.msra.mxu0 0.0
        %797 = vmatprep.subr.mxu0 0.0
        %798 = vmatpush1.msra.mxu0 0.0
        %799 = vmatprep.subr.mxu0 0.0
        %800 = vmatpush1.msra.mxu0 0.0
        %801 = vmatprep.subr.mxu0 0.0
        %802 = vmatpush1.msra.mxu0 0.0
        %803 = vmatprep.subr.mxu0 0.0
        %804 = vmatpush1.msra.mxu0 0.0
        %805 = vmatprep.subr.mxu0 0.0
        %806 = vmatpush1.msra.mxu0 0.0
        %807 = vmatprep.subr.mxu0 0.0
        %808 = vmatpush1.msra.mxu0 0.0
        %809 = vmatprep.subr.mxu0 0.0
        %810 = vmatpush1.msra.mxu0 0.0
        %811 = vmatprep.subr.mxu0 0.0
        %812 = vmatpush1.msra.mxu0 0.0
        %813 = vmatprep.subr.mxu0 0.0
        %814 = vmatpush1.msra.mxu0 0.0
        %815 = vmatprep.subr.mxu0 0.0
        %816 = vmatpush1.msra.mxu0 0.0
        %817 = vmatprep.subr.mxu0 0.0
        %818 = vmatpush1.msra.mxu0 0.0
        %819 = vmatprep.subr.mxu0 0.0
        %820 = vmatpush1.msra.mxu0 0.0
        %821 = vmatprep.subr.mxu0 0.0
        %822 = vmatpush1.msra.mxu0 0.0
        %823 = vmatprep.subr.mxu0 0.0
        %824 = vmatpush1.msra.mxu0 0.0
        %825 = vmatprep.subr.mxu0 0.0
        %826 = vmatpush1.msra.mxu0 0.0
        %827 = vmatprep.subr.mxu0 0.0
        %828 = vmatpush1.msra.mxu0 0.0
        %829 = vmatprep.subr.mxu0 0.0
        %830 = vmatpush1.msra.mxu0 0.0
        %831 = vmatprep.subr.mxu0 0.0
        %832 = vmatpush1.msra.mxu0 0.0
        %833 = vmatprep.subr.mxu0 0.0
        %834 = vmatpush1.msra.mxu0 0.0
        %835 = vmatprep.subr.mxu0 0.0
        %836 = vmatpush1.msra.mxu0 0.0
        %837 = vmatprep.subr.mxu0 0.0
        %838 = vmatpush1.msra.mxu0 0.0
        %839 = vmatprep.subr.mxu0 0.0
        %840 = vmatpush1.msra.mxu0 0.0
        %841 = vmatprep.subr.mxu0 0.0
        %842 = vmatpush1.msra.mxu0 0.0
        %843 = vmatprep.subr.mxu0 0.0
        %844 = vmatpush1.msra.mxu0 0.0
        %845 = vmatprep.mubr.f32.mxu0 0.0
        %846 = vmatmul.mubr.f32.gmra.mrb[0].mxu0 %v779
        %v847 = vpop.f32.mrb[0].mxu0
        %v848 = vadd.f32 0.0, %v847
        %v849 = vpop.f32.mrb[0].mxu0
        %850 = vdwg.mxu0
        %v851 = vrcp.pop %v777
        %v852 = vmul.f32 %v848, %v851
        %853 = vrot.lane.b32.xlu0 %v525, 120
        %v854 = vpop.permute.xlu0 %853
        %855 = vrot.lane.b32.xlu0 %v607, 120
        %v856 = vpop.permute.xlu0 %855
        %v857 = vsel %vm692, %v854, 0
        %v859 = vsel %vm692, %v856, 0
        %861 = vmatprep.subr.mxu0 0.0
        %862 = vmatpush1.xpose.msra.mxu0 %v859
        %863 = vmatprep.subr.mxu0 0.0
        %864 = vmatpush1.xpose.msra.mxu0 0.0
        %865 = vmatprep.subr.mxu0 0.0
        %866 = vmatpush1.xpose.msra.mxu0 0.0
        %867 = vmatprep.subr.mxu0 0.0
        %868 = vmatpush1.xpose.msra.mxu0 0.0
        %869 = vmatprep.subr.mxu0 0.0
        %870 = vmatpush1.xpose.msra.mxu0 0.0
        %871 = vmatprep.subr.mxu0 0.0
        %872 = vmatpush1.xpose.msra.mxu0 0.0
        %873 = vmatprep.subr.mxu0 0.0
        %874 = vmatpush1.xpose.msra.mxu0 0.0
        %875 = vmatprep.subr.mxu0 0.0
        %876 = vmatpush1.xpose.msra.mxu0 0.0
        %877 = vmatprep.subr.mxu0 0.0
        %878 = vmatpush1.xpose.msra.mxu0 0.0
        %879 = vmatprep.subr.mxu0 0.0
        %880 = vmatpush1.xpose.msra.mxu0 0.0
        %881 = vmatprep.subr.mxu0 0.0
        %882 = vmatpush1.xpose.msra.mxu0 0.0
        %883 = vmatprep.subr.mxu0 0.0
        %884 = vmatpush1.xpose.msra.mxu0 0.0
        %885 = vmatprep.subr.mxu0 0.0
        %886 = vmatpush1.xpose.msra.mxu0 0.0
        %887 = vmatprep.subr.mxu0 0.0
        %888 = vmatpush1.xpose.msra.mxu0 0.0
        %889 = vmatprep.subr.mxu0 0.0
        %890 = vmatpush1.xpose.msra.mxu0 0.0
        %891 = vmatprep.subr.mxu0 0.0
        %892 = vmatpush1.xpose.msra.mxu0 0.0
        %893 = vmatprep.subr.mxu0 0.0
        %894 = vmatpush1.xpose.msra.mxu0 0.0
        %895 = vmatprep.subr.mxu0 0.0
        %896 = vmatpush1.xpose.msra.mxu0 0.0
        %897 = vmatprep.subr.mxu0 0.0
        %898 = vmatpush1.xpose.msra.mxu0 0.0
        %899 = vmatprep.subr.mxu0 0.0
        %900 = vmatpush1.xpose.msra.mxu0 0.0
        %901 = vmatprep.subr.mxu0 0.0
        %902 = vmatpush1.xpose.msra.mxu0 0.0
        %903 = vmatprep.subr.mxu0 0.0
        %904 = vmatpush1.xpose.msra.mxu0 0.0
        %905 = vmatprep.subr.mxu0 0.0
        %906 = vmatpush1.xpose.msra.mxu0 0.0
        %907 = vmatprep.subr.mxu0 0.0
        %908 = vmatpush1.xpose.msra.mxu0 0.0
        %909 = vmatprep.subr.mxu0 0.0
        %910 = vmatpush1.xpose.msra.mxu0 0.0
        %911 = vmatprep.subr.mxu0 0.0
        %912 = vmatpush1.xpose.msra.mxu0 0.0
        %913 = vmatprep.subr.mxu0 0.0
        %914 = vmatpush1.xpose.msra.mxu0 0.0
        %915 = vmatprep.subr.mxu0 0.0
        %916 = vmatpush1.xpose.msra.mxu0 0.0
        %917 = vmatprep.subr.mxu0 0.0
        %918 = vmatpush1.xpose.msra.mxu0 0.0
        %919 = vmatprep.subr.mxu0 0.0
        %920 = vmatpush1.xpose.msra.mxu0 0.0
        %921 = vmatprep.subr.mxu0 0.0
        %922 = vmatpush1.xpose.msra.mxu0 0.0
        %923 = vmatprep.subr.mxu0 0.0
        %924 = vmatpush1.xpose.msra.mxu0 0.0
        %925 = vmatprep.mubr.f32.mxu0 0.0
        %926 = vmatmul.mubr.f32.gmra.mrb[0].mxu0 %v857
        %v927 = vpop.f32.mrb[0].mxu0
        %v928 = vadd.f32 0.0, %v927
        %v929 = vpop.f32.mrb[0].mxu0
        %930 = vdwg.mxu0
        %v931 = vsel %vm692, %v928, -inf
        %932 = vmax.xlane.f32.xlu0 %v931
        %v933 = vpop.xlane.xlu0 %932
        %v934 = vsub.f32 %v928, %v933
        %v935 = vmul.f32 %v934, 1.442695
        %v936 = vpow.pop %v935
        %v937 = vsel %vm692, %v936, 0.0
        %938 = vadd.xlane.f32.xlu0 %v937
        %v939 = vpop.xlane.xlu0 %938
        %941 = vrot.lane.b32.xlu0 %v689, 120
        %v942 = vpop.permute.xlu0 %941
        %v945 = vsel %vm692, %v936, 0
        %947 = vmatprep.subr.mxu0 0.0
        %948 = vmatpush1.msra.mxu0 %v942
        %949 = vmatprep.subr.mxu0 0.0
        %950 = vmatpush1.msra.mxu0 0.0
        %951 = vmatprep.subr.mxu0 0.0
        %952 = vmatpush1.msra.mxu0 0.0
        %953 = vmatprep.subr.mxu0 0.0
        %954 = vmatpush1.msra.mxu0 0.0
        %955 = vmatprep.subr.mxu0 0.0
        %956 = vmatpush1.msra.mxu0 0.0
        %957 = vmatprep.subr.mxu0 0.0
        %958 = vmatpush1.msra.mxu0 0.0
        %959 = vmatprep.subr.mxu0 0.0
        %960 = vmatpush1.msra.mxu0 0.0
        %961 = vmatprep.subr.mxu0 0.0
        %962 = vmatpush1.msra.mxu0 0.0
        %963 = vmatprep.subr.mxu0 0.0
        %964 = vmatpush1.msra.mxu0 0.0
        %965 = vmatprep.subr.mxu0 0.0
        %966 = vmatpush1.msra.mxu0 0.0
        %967 = vmatprep.subr.mxu0 0.0
        %968 = vmatpush1.msra.mxu0 0.0
        %969 = vmatprep.subr.mxu0 0.0
        %970 = vmatpush1.msra.mxu0 0.0
        %971 = vmatprep.subr.mxu0 0.0
        %972 = vmatpush1.msra.mxu0 0.0
        %973 = vmatprep.subr.mxu0 0.0
        %974 = vmatpush1.msra.mxu0 0.0
        %975 = vmatprep.subr.mxu0 0.0
        %976 = vmatpush1.msra.mxu0 0.0
        %977 = vmatprep.subr.mxu0 0.0
        %978 = vmatpush1.msra.mxu0 0.0
        %979 = vmatprep.subr.mxu0 0.0
        %980 = vmatpush1.msra.mxu0 0.0
        %981 = vmatprep.subr.mxu0 0.0
        %982 = vmatpush1.msra.mxu0 0.0
        %983 = vmatprep.subr.mxu0 0.0
        %984 = vmatpush1.msra.mxu0 0.0
        %985 = vmatprep.subr.mxu0 0.0
        %986 = vmatpush1.msra.mxu0 0.0
        %987 = vmatprep.subr.mxu0 0.0
        %988 = vmatpush1.msra.mxu0 0.0
        %989 = vmatprep.subr.mxu0 0.0
        %990 = vmatpush1.msra.mxu0 0.0
        %991 = vmatprep.subr.mxu0 0.0
        %992 = vmatpush1.msra.mxu0 0.0
        %993 = vmatprep.subr.mxu0 0.0
        %994 = vmatpush1.msra.mxu0 0.0
        %995 = vmatprep.subr.mxu0 0.0
        %996 = vmatpush1.msra.mxu0 0.0
        %997 = vmatprep.subr.mxu0 0.0
        %998 = vmatpush1.msra.mxu0 0.0
        %999 = vmatprep.subr.mxu0 0.0
        %1000 = vmatpush1.msra.mxu0 0.0
        %1001 = vmatprep.subr.mxu0 0.0
        %1002 = vmatpush1.msra.mxu0 0.0
        %1003 = vmatprep.subr.mxu0 0.0
        %1004 = vmatpush1.msra.mxu0 0.0
        %1005 = vmatprep.subr.mxu0 0.0
        %1006 = vmatpush1.msra.mxu0 0.0
        %1007 = vmatprep.subr.mxu0 0.0
        %1008 = vmatpush1.msra.mxu0 0.0
        %1009 = vmatprep.subr.mxu0 0.0
        %1010 = vmatpush1.msra.mxu0 0.0
        %1011 = vmatprep.mubr.f32.mxu0 0.0
        %1012 = vmatmul.mubr.f32.gmra.mrb[0].mxu0 %v945
        %v1013 = vpop.f32.mrb[0].mxu0
        %v1014 = vadd.f32 0.0, %v1013
        %v1015 = vpop.f32.mrb[0].mxu0
        %1016 = vdwg.mxu0
        %v1017 = vrcp.pop %v939
        %v1018 = vmul.f32 %v1014, %v1017
        %1019 = vrot.lane.b32.xlu0 %v525, 112
        %v1020 = vpop.permute.xlu0 %1019
        %1021 = vrot.lane.b32.xlu0 %v607, 112
        %v1022 = vpop.permute.xlu0 %1021
        %v1023 = vsel %vm692, %v1020, 0
        %v1025 = vsel %vm692, %v1022, 0
        %1027 = vmatprep.subr.mxu0 0.0
        %1028 = vmatpush1.xpose.msra.mxu0 %v1025
        %1029 = vmatprep.subr.mxu0 0.0
        %1030 = vmatpush1.xpose.msra.mxu0 0.0
        %1031 = vmatprep.subr.mxu0 0.0
        %1032 = vmatpush1.xpose.msra.mxu0 0.0
        %1033 = vmatprep.subr.mxu0 0.0
        %1034 = vmatpush1.xpose.msra.mxu0 0.0
        %1035 = vmatprep.subr.mxu0 0.0
        %1036 = vmatpush1.xpose.msra.mxu0 0.0
        %1037 = vmatprep.subr.mxu0 0.0
        %1038 = vmatpush1.xpose.msra.mxu0 0.0
        %1039 = vmatprep.subr.mxu0 0.0
        %1040 = vmatpush1.xpose.msra.mxu0 0.0
        %1041 = vmatprep.subr.mxu0 0.0
        %1042 = vmatpush1.xpose.msra.mxu0 0.0
        %1043 = vmatprep.subr.mxu0 0.0
        %1044 = vmatpush1.xpose.msra.mxu0 0.0
        %1045 = vmatprep.subr.mxu0 0.0
        %1046 = vmatpush1.xpose.msra.mxu0 0.0
        %1047 = vmatprep.subr.mxu0 0.0
        %1048 = vmatpush1.xpose.msra.mxu0 0.0
        %1049 = vmatprep.subr.mxu0 0.0
        %1050 = vmatpush1.xpose.msra.mxu0 0.0
        %1051 = vmatprep.subr.mxu0 0.0
        %1052 = vmatpush1.xpose.msra.mxu0 0.0
        %1053 = vmatprep.subr.mxu0 0.0
        %1054 = vmatpush1.xpose.msra.mxu0 0.0
        %1055 = vmatprep.subr.mxu0 0.0
        %1056 = vmatpush1.xpose.msra.mxu0 0.0
        %1057 = vmatprep.subr.mxu0 0.0
        %1058 = vmatpush1.xpose.msra.mxu0 0.0
        %1059 = vmatprep.subr.mxu0 0.0
        %1060 = vmatpush1.xpose.msra.mxu0 0.0
        %1061 = vmatprep.subr.mxu0 0.0
        %1062 = vmatpush1.xpose.msra.mxu0 0.0
        %1063 = vmatprep.subr.mxu0 0.0
        %1064 = vmatpush1.xpose.msra.mxu0 0.0
        %1065 = vmatprep.subr.mxu0 0.0
        %1066 = vmatpush1.xpose.msra.mxu0 0.0
        %1067 = vmatprep.subr.mxu0 0.0
        %1068 = vmatpush1.xpose.msra.mxu0 0.0
        %1069 = vmatprep.subr.mxu0 0.0
        %1070 = vmatpush1.xpose.msra.mxu0 0.0
        %1071 = vmatprep.subr.mxu0 0.0
        %1072 = vmatpush1.xpose.msra.mxu0 0.0
        %1073 = vmatprep.subr.mxu0 0.0
        %1074 = vmatpush1.xpose.msra.mxu0 0.0
        %1075 = vmatprep.subr.mxu0 0.0
        %1076 = vmatpush1.xpose.msra.mxu0 0.0
        %1077 = vmatprep.subr.mxu0 0.0
        %1078 = vmatpush1.xpose.msra.mxu0 0.0
        %1079 = vmatprep.subr.mxu0 0.0
        %1080 = vmatpush1.xpose.msra.mxu0 0.0
        %1081 = vmatprep.subr.mxu0 0.0
        %1082 = vmatpush1.xpose.msra.mxu0 0.0
        %1083 = vmatprep.subr.mxu0 0.0
        %1084 = vmatpush1.xpose.msra.mxu0 0.0
        %1085 = vmatprep.subr.mxu0 0.0
        %1086 = vmatpush1.xpose.msra.mxu0 0.0
        %1087 = vmatprep.subr.mxu0 0.0
        %1088 = vmatpush1.xpose.msra.mxu0 0.0
        %1089 = vmatprep.subr.mxu0 0.0
        %1090 = vmatpush1.xpose.msra.mxu0 0.0
        %1091 = vmatprep.mubr.f32.mxu0 0.0
        %1092 = vmatmul.mubr.f32.gmra.mrb[0].mxu0 %v1023
        %v1093 = vpop.f32.mrb[0].mxu0
        %v1094 = vadd.f32 0.0, %v1093
        %v1095 = vpop.f32.mrb[0].mxu0
        %1096 = vdwg.mxu0
        %v1097 = vsel %vm692, %v1094, -inf
        %1098 = vmax.xlane.f32.xlu0 %v1097
        %v1099 = vpop.xlane.xlu0 %1098
        %v1100 = vsub.f32 %v1094, %v1099
        %v1101 = vmul.f32 %v1100, 1.442695
        %v1102 = vpow.pop %v1101
        %v1103 = vsel %vm692, %v1102, 0.0
        %1104 = vadd.xlane.f32.xlu0 %v1103
        %v1105 = vpop.xlane.xlu0 %1104
        %1106 = vrot.lane.b32.xlu0 %v689, 112
        %v1107 = vpop.permute.xlu0 %1106
        %v1110 = vsel %vm692, %v1102, 0
        %1112 = vmatprep.subr.mxu0 0.0
        %1113 = vmatpush1.msra.mxu0 %v1107
        %1114 = vmatprep.subr.mxu0 0.0
        %1115 = vmatpush1.msra.mxu0 0.0
        %1116 = vmatprep.subr.mxu0 0.0
        %1117 = vmatpush1.msra.mxu0 0.0
        %1118 = vmatprep.subr.mxu0 0.0
        %1119 = vmatpush1.msra.mxu0 0.0
        %1120 = vmatprep.subr.mxu0 0.0
        %1121 = vmatpush1.msra.mxu0 0.0
        %1122 = vmatprep.subr.mxu0 0.0
        %1123 = vmatpush1.msra.mxu0 0.0
        %1124 = vmatprep.subr.mxu0 0.0
        %1125 = vmatpush1.msra.mxu0 0.0
        %1126 = vmatprep.subr.mxu0 0.0
        %1127 = vmatpush1.msra.mxu0 0.0
        %1128 = vmatprep.subr.mxu0 0.0
        %1129 = vmatpush1.msra.mxu0 0.0
        %1130 = vmatprep.subr.mxu0 0.0
        %1131 = vmatpush1.msra.mxu0 0.0
        %1132 = vmatprep.subr.mxu0 0.0
        %1133 = vmatpush1.msra.mxu0 0.0
        %1134 = vmatprep.subr.mxu0 0.0
        %1135 = vmatpush1.msra.mxu0 0.0
        %1136 = vmatprep.subr.mxu0 0.0
        %1137 = vmatpush1.msra.mxu0 0.0
        %1138 = vmatprep.subr.mxu0 0.0
        %1139 = vmatpush1.msra.mxu0 0.0
        %1140 = vmatprep.subr.mxu0 0.0
        %1141 = vmatpush1.msra.mxu0 0.0
        %1142 = vmatprep.subr.mxu0 0.0
        %1143 = vmatpush1.msra.mxu0 0.0
        %1144 = vmatprep.subr.mxu0 0.0
        %1145 = vmatpush1.msra.mxu0 0.0
        %1146 = vmatprep.subr.mxu0 0.0
        %1147 = vmatpush1.msra.mxu0 0.0
        %1148 = vmatprep.subr.mxu0 0.0
        %1149 = vmatpush1.msra.mxu0 0.0
        %1150 = vmatprep.subr.mxu0 0.0
        %1151 = vmatpush1.msra.mxu0 0.0
        %1152 = vmatprep.subr.mxu0 0.0
        %1153 = vmatpush1.msra.mxu0 0.0
        %1154 = vmatprep.subr.mxu0 0.0
        %1155 = vmatpush1.msra.mxu0 0.0
        %1156 = vmatprep.subr.mxu0 0.0
        %1157 = vmatpush1.msra.mxu0 0.0
        %1158 = vmatprep.subr.mxu0 0.0
        %1159 = vmatpush1.msra.mxu0 0.0
        %1160 = vmatprep.subr.mxu0 0.0
        %1161 = vmatpush1.msra.mxu0 0.0
        %1162 = vmatprep.subr.mxu0 0.0
        %1163 = vmatpush1.msra.mxu0 0.0
        %1164 = vmatprep.subr.mxu0 0.0
        %1165 = vmatpush1.msra.mxu0 0.0
        %1166 = vmatprep.subr.mxu0 0.0
        %1167 = vmatpush1.msra.mxu0 0.0
        %1168 = vmatprep.subr.mxu0 0.0
        %1169 = vmatpush1.msra.mxu0 0.0
        %1170 = vmatprep.subr.mxu0 0.0
        %1171 = vmatpush1.msra.mxu0 0.0
        %1172 = vmatprep.subr.mxu0 0.0
        %1173 = vmatpush1.msra.mxu0 0.0
        %1174 = vmatprep.subr.mxu0 0.0
        %1175 = vmatpush1.msra.mxu0 0.0
        %1176 = vmatprep.mubr.f32.mxu0 0.0
        %1177 = vmatmul.mubr.f32.gmra.mrb[0].mxu0 %v1110
        %v1178 = vpop.f32.mrb[0].mxu0
        %v1179 = vadd.f32 0.0, %v1178
        %v1180 = vpop.f32.mrb[0].mxu0
        %1181 = vdwg.mxu0
        %v1182 = vrcp.pop %v1105
        %v1183 = vmul.f32 %v1179, %v1182
        %1184 = vrot.lane.b32.xlu0 %v525, 104
        %v1185 = vpop.permute.xlu0 %1184
        %1186 = vrot.lane.b32.xlu0 %v607, 104
        %v1187 = vpop.permute.xlu0 %1186
        %v1188 = vsel %vm692, %v1185, 0
        %v1190 = vsel %vm692, %v1187, 0
        %1192 = vmatprep.subr.mxu0 0.0
        %1193 = vmatpush1.xpose.msra.mxu0 %v1190
        %1194 = vmatprep.subr.mxu0 0.0
        %1195 = vmatpush1.xpose.msra.mxu0 0.0
        %1196 = vmatprep.subr.mxu0 0.0
        %1197 = vmatpush1.xpose.msra.mxu0 0.0
        %1198 = vmatprep.subr.mxu0 0.0
        %1199 = vmatpush1.xpose.msra.mxu0 0.0
        %1200 = vmatprep.subr.mxu0 0.0
        %1201 = vmatpush1.xpose.msra.mxu0 0.0
        %1202 = vmatprep.subr.mxu0 0.0
        %1203 = vmatpush1.xpose.msra.mxu0 0.0
        %1204 = vmatprep.subr.mxu0 0.0
        %1205 = vmatpush1.xpose.msra.mxu0 0.0
        %1206 = vmatprep.subr.mxu0 0.0
        %1207 = vmatpush1.xpose.msra.mxu0 0.0
        %1208 = vmatprep.subr.mxu0 0.0
        %1209 = vmatpush1.xpose.msra.mxu0 0.0
        %1210 = vmatprep.subr.mxu0 0.0
        %1211 = vmatpush1.xpose.msra.mxu0 0.0
        %1212 = vmatprep.subr.mxu0 0.0
        %1213 = vmatpush1.xpose.msra.mxu0 0.0
        %1214 = vmatprep.subr.mxu0 0.0
        %1215 = vmatpush1.xpose.msra.mxu0 0.0
        %1216 = vmatprep.subr.mxu0 0.0
        %1217 = vmatpush1.xpose.msra.mxu0 0.0
        %1218 = vmatprep.subr.mxu0 0.0
        %1219 = vmatpush1.xpose.msra.mxu0 0.0
        %1220 = vmatprep.subr.mxu0 0.0
        %1221 = vmatpush1.xpose.msra.mxu0 0.0
        %1222 = vmatprep.subr.mxu0 0.0
        %1223 = vmatpush1.xpose.msra.mxu0 0.0
        %1224 = vmatprep.subr.mxu0 0.0
        %1225 = vmatpush1.xpose.msra.mxu0 0.0
        %1226 = vmatprep.subr.mxu0 0.0
        %1227 = vmatpush1.xpose.msra.mxu0 0.0
        %1228 = vmatprep.subr.mxu0 0.0
        %1229 = vmatpush1.xpose.msra.mxu0 0.0
        %1230 = vmatprep.subr.mxu0 0.0
        %1231 = vmatpush1.xpose.msra.mxu0 0.0
        %1232 = vmatprep.subr.mxu0 0.0
        %1233 = vmatpush1.xpose.msra.mxu0 0.0
        %1234 = vmatprep.subr.mxu0 0.0
        %1235 = vmatpush1.xpose.msra.mxu0 0.0
        %1236 = vmatprep.subr.mxu0 0.0
        %1237 = vmatpush1.xpose.msra.mxu0 0.0
        %1238 = vmatprep.subr.mxu0 0.0
        %1239 = vmatpush1.xpose.msra.mxu0 0.0
        %1240 = vmatprep.subr.mxu0 0.0
        %1241 = vmatpush1.xpose.msra.mxu0 0.0
        %1242 = vmatprep.subr.mxu0 0.0
        %1243 = vmatpush1.xpose.msra.mxu0 0.0
        %1244 = vmatprep.subr.mxu0 0.0
        %1245 = vmatpush1.xpose.msra.mxu0 0.0
        %1246 = vmatprep.subr.mxu0 0.0
        %1247 = vmatpush1.xpose.msra.mxu0 0.0
        %1248 = vmatprep.subr.mxu0 0.0
        %1249 = vmatpush1.xpose.msra.mxu0 0.0
        %1250 = vmatprep.subr.mxu0 0.0
        %1251 = vmatpush1.xpose.msra.mxu0 0.0
        %1252 = vmatprep.subr.mxu0 0.0
        %1253 = vmatpush1.xpose.msra.mxu0 0.0
        %1254 = vmatprep.subr.mxu0 0.0
        %1255 = vmatpush1.xpose.msra.mxu0 0.0
        %1256 = vmatprep.mubr.f32.mxu0 0.0
        %1257 = vmatmul.mubr.f32.gmra.mrb[0].mxu0 %v1188
        %v1258 = vpop.f32.mrb[0].mxu0
        %v1259 = vadd.f32 0.0, %v1258
        %v1260 = vpop.f32.mrb[0].mxu0
        %1261 = vdwg.mxu0
        %v1262 = vsel %vm692, %v1259, -inf
        %1263 = vmax.xlane.f32.xlu0 %v1262
        %v1264 = vpop.xlane.xlu0 %1263
        %v1265 = vsub.f32 %v1259, %v1264
        %v1266 = vmul.f32 %v1265, 1.442695
        %v1267 = vpow.pop %v1266
        %v1268 = vsel %vm692, %v1267, 0.0
        %1269 = vadd.xlane.f32.xlu0 %v1268
        %v1270 = vpop.xlane.xlu0 %1269
        %1271 = vrot.lane.b32.xlu0 %v689, 104
        %v1272 = vpop.permute.xlu0 %1271
        %v1275 = vsel %vm692, %v1267, 0
        %1277 = vmatprep.subr.mxu0 0.0
        %1278 = vmatpush1.msra.mxu0 %v1272
        %1279 = vmatprep.subr.mxu0 0.0
        %1280 = vmatpush1.msra.mxu0 0.0
        %1281 = vmatprep.subr.mxu0 0.0
        %1282 = vmatpush1.msra.mxu0 0.0
        %1283 = vmatprep.subr.mxu0 0.0
        %1284 = vmatpush1.msra.mxu0 0.0
        %1285 = vmatprep.subr.mxu0 0.0
        %1286 = vmatpush1.msra.mxu0 0.0
        %1287 = vmatprep.subr.mxu0 0.0
        %1288 = vmatpush1.msra.mxu0 0.0
        %1289 = vmatprep.subr.mxu0 0.0
        %1290 = vmatpush1.msra.mxu0 0.0
        %1291 = vmatprep.subr.mxu0 0.0
        %1292 = vmatpush1.msra.mxu0 0.0
        %1293 = vmatprep.subr.mxu0 0.0
        %1294 = vmatpush1.msra.mxu0 0.0
        %1295 = vmatprep.subr.mxu0 0.0
        %1296 = vmatpush1.msra.mxu0 0.0
        %1297 = vmatprep.subr.mxu0 0.0
        %1298 = vmatpush1.msra.mxu0 0.0
        %1299 = vmatprep.subr.mxu0 0.0
        %1300 = vmatpush1.msra.mxu0 0.0
        %1301 = vmatprep.subr.mxu0 0.0
        %1302 = vmatpush1.msra.mxu0 0.0
        %1303 = vmatprep.subr.mxu0 0.0
        %1304 = vmatpush1.msra.mxu0 0.0
        %1305 = vmatprep.subr.mxu0 0.0
        %1306 = vmatpush1.msra.mxu0 0.0
        %1307 = vmatprep.subr.mxu0 0.0
        %1308 = vmatpush1.msra.mxu0 0.0
        %1309 = vmatprep.subr.mxu0 0.0
        %1310 = vmatpush1.msra.mxu0 0.0
        %1311 = vmatprep.subr.mxu0 0.0
        %1312 = vmatpush1.msra.mxu0 0.0
        %1313 = vmatprep.subr.mxu0 0.0
        %1314 = vmatpush1.msra.mxu0 0.0
        %1315 = vmatprep.subr.mxu0 0.0
        %1316 = vmatpush1.msra.mxu0 0.0
        %1317 = vmatprep.subr.mxu0 0.0
        %1318 = vmatpush1.msra.mxu0 0.0
        %1319 = vmatprep.subr.mxu0 0.0
        %1320 = vmatpush1.msra.mxu0 0.0
        %1321 = vmatprep.subr.mxu0 0.0
        %1322 = vmatpush1.msra.mxu0 0.0
        %1323 = vmatprep.subr.mxu0 0.0
        %1324 = vmatpush1.msra.mxu0 0.0
        %1325 = vmatprep.subr.mxu0 0.0
        %1326 = vmatpush1.msra.mxu0 0.0
        %1327 = vmatprep.subr.mxu0 0.0
        %1328 = vmatpush1.msra.mxu0 0.0
        %1329 = vmatprep.subr.mxu0 0.0
        %1330 = vmatpush1.msra.mxu0 0.0
        %1331 = vmatprep.subr.mxu0 0.0
        %1332 = vmatpush1.msra.mxu0 0.0
        %1333 = vmatprep.subr.mxu0 0.0
        %1334 = vmatpush1.msra.mxu0 0.0
        %1335 = vmatprep.subr.mxu0 0.0
        %1336 = vmatpush1.msra.mxu0 0.0
        %1337 = vmatprep.subr.mxu0 0.0
        %1338 = vmatpush1.msra.mxu0 0.0
        %1339 = vmatprep.subr.mxu0 0.0
        %1340 = vmatpush1.msra.mxu0 0.0
        %1341 = vmatprep.mubr.f32.mxu0 0.0
        %1342 = vmatmul.mubr.f32.gmra.mrb[0].mxu0 %v1275
        %v1343 = vpop.f32.mrb[0].mxu0
        %v1344 = vadd.f32 0.0, %v1343
        %v1345 = vpop.f32.mrb[0].mxu0
        %1346 = vdwg.mxu0
        %v1347 = vrcp.pop %v1270
        %v1348 = vmul.f32 %v1344, %v1347
        %1350 = vrot.lane.b32.xlu0 %v1018, 8
        %v1351 = vpop.permute.xlu0 %1350
        %1354 = vrot.lane.b32.xlu0 %v1183, 16
        %v1355 = vpop.permute.xlu0 %1354
        %1358 = vrot.lane.b32.xlu0 %v1348, 24
        %v1359 = vpop.permute.xlu0 %1358
        %v1361 = vsel %vm692, %v852, %v1351
        %vm1362 = vcmask 130048
        %v1363 = vsel %vm1362, %v1361, %v1355
        %vm1364 = vcmask 195584
        %v1365 = vsel %vm1364, %v1363, %v1359
        %v1366 = vld [vmem:[#allocation2] sm:$0xff]
        %v1367 = vld [vmem:[#allocation11] sm:$0xff]
        %v1368 = vld [vmem:[#allocation11 + $0x8] sm:$0xff]
        %v1369 = vld [vmem:[#allocation11 + $0x10] sm:$0xff]
        %v1370 = vld [vmem:[#allocation11 + $0x18] sm:$0xff]
        %v1372 = vsel %vm454, %v1365, 0
        %1374 = vmatprep.subr.mxu0 0.0
        %1375 = vmatpush1.msra.mxu0 %v1367
        %1376 = vmatprep.subr.mxu0 0.0
        %1377 = vmatpush1.msra.mxu0 %v1368
        %1378 = vmatprep.subr.mxu0 0.0
        %1379 = vmatpush1.msra.mxu0 %v1369
        %1380 = vmatprep.subr.mxu0 0.0
        %1381 = vmatpush1.msra.mxu0 %v1370
        %1382 = vmatprep.subr.mxu0 0.0
        %1383 = vmatpush1.msra.mxu0 0.0
        %1384 = vmatprep.subr.mxu0 0.0
        %1385 = vmatpush1.msra.mxu0 0.0
        %1386 = vmatprep.subr.mxu0 0.0
        %1387 = vmatpush1.msra.mxu0 0.0
        %1388 = vmatprep.subr.mxu0 0.0
        %1389 = vmatpush1.msra.mxu0 0.0
        %1390 = vmatprep.subr.mxu0 0.0
        %1391 = vmatpush1.msra.mxu0 0.0
        %1392 = vmatprep.subr.mxu0 0.0
        %1393 = vmatpush1.msra.mxu0 0.0
        %1394 = vmatprep.subr.mxu0 0.0
        %1395 = vmatpush1.msra.mxu0 0.0
        %1396 = vmatprep.subr.mxu0 0.0
        %1397 = vmatpush1.msra.mxu0 0.0
        %1398 = vmatprep.subr.mxu0 0.0
        %1399 = vmatpush1.msra.mxu0 0.0
        %1400 = vmatprep.subr.mxu0 0.0
        %1401 = vmatpush1.msra.mxu0 0.0
        %1402 = vmatprep.subr.mxu0 0.0
        %1403 = vmatpush1.msra.mxu0 0.0
        %1404 = vmatprep.subr.mxu0 0.0
        %1405 = vmatpush1.msra.mxu0 0.0
        %1406 = vmatprep.subr.mxu0 0.0
        %1407 = vmatpush1.msra.mxu0 0.0
        %1408 = vmatprep.subr.mxu0 0.0
        %1409 = vmatpush1.msra.mxu0 0.0
        %1410 = vmatprep.subr.mxu0 0.0
        %1411 = vmatpush1.msra.mxu0 0.0
        %1412 = vmatprep.subr.mxu0 0.0
        %1413 = vmatpush1.msra.mxu0 0.0
        %1414 = vmatprep.subr.mxu0 0.0
        %1415 = vmatpush1.msra.mxu0 0.0
        %1416 = vmatprep.subr.mxu0 0.0
        %1417 = vmatpush1.msra.mxu0 0.0
        %1418 = vmatprep.subr.mxu0 0.0
        %1419 = vmatpush1.msra.mxu0 0.0
        %1420 = vmatprep.subr.mxu0 0.0
        %1421 = vmatpush1.msra.mxu0 0.0
        %1422 = vmatprep.subr.mxu0 0.0
        %1423 = vmatpush1.msra.mxu0 0.0
        %1424 = vmatprep.subr.mxu0 0.0
        %1425 = vmatpush1.msra.mxu0 0.0
        %1426 = vmatprep.subr.mxu0 0.0
        %1427 = vmatpush1.msra.mxu0 0.0
        %1428 = vmatprep.subr.mxu0 0.0
        %1429 = vmatpush1.msra.mxu0 0.0
        %1430 = vmatprep.subr.mxu0 0.0
        %1431 = vmatpush1.msra.mxu0 0.0
        %1432 = vmatprep.subr.mxu0 0.0
        %1433 = vmatpush1.msra.mxu0 0.0
        %1434 = vmatprep.subr.mxu0 0.0
        %1435 = vmatpush1.msra.mxu0 0.0
        %1436 = vmatprep.subr.mxu0 0.0
        %1437 = vmatpush1.msra.mxu0 0.0
        %1438 = vmatprep.mubr.f32.mxu0 0.0
        %1439 = vmatmul.mubr.f32.gmra.mrb[0].mxu0 %v1372
        %v1440 = vpop.f32.mrb[0].mxu0
        %v1441 = vadd.f32 0.0, %v1440
        %v1442 = vpop.f32.mrb[0].mxu0
        %1443 = vdwg.mxu0
        %v1444 = vadd.f32 %v1366, %v1441
        %1445 = vst.msk [vmem:[#allocation2] sm:$0xff] %vm454, %v1444
        // Predicated region
        $region73: #{tpu_custom_call.1} parent=47 // pred_check
          %p1446 = pneg %p434
        $region74: #{tpu_custom_call.1} parent=47 // pred_check_branch
          %1448 = sbr.rel (%p1446) target = $region76
        $region75: #{tpu_custom_call.1} parent=47 // pred_region
          %v1449 = vld [vmem:[#allocation2] sm:$0xff]
          %v1450 = vld [vmem:[%s6] sm:$0x1]
          %v1452 = vlaneseq
          %v1453 = vshrl.u32 %v1452, 7
          %v1454 = vsub.s32 0, %v1453
          %v1455 = vrot.slane %v1450, %v1454
          %v1457 = vadd.f32 %v1449, %v1455
          %1458 = vst.msk [vmem:[%s433] sm:$0xff] %vm454, %v1457
        $region76: #{tpu_custom_call.1} parent=47 // pred_fallthru
          _
        %s1459 = sand.u32 %s231, 1
        %s1460 = scalar_lea.sflag [#allocation5], %s1459
        %s1461 = sand.u32 %s231, 1
        %s1462 = smul.addr %s1461, 8
        %s1463 = scalar_lea.vmem [#allocation12], %s1462
        // Predicated region
        $region77: #{tpu_custom_call.1} parent=47 // pred_check
          %p1464 = pneg %p241
        $region78: #{tpu_custom_call.1} parent=47 // pred_check_branch
          %1466 = sbr.rel (%p1464) target = $region80
        $region79: #{tpu_custom_call.1} parent=47 // pred_region
          %s1468 = ssub.s32 128, 128
          %1469 = vsyncadd %s1460, %s1468
          %s1470 = sadd.s32 %s34, %s33
          %s1471 = smul.addr %s1470, 128
          %s1472 = scalar_lea.hbm %s7, %s1471
          %s1474 = sshll.u32 %s1463, 4
          %s1475 = int_to_ptr.vmem [resolvable:$true] %s1474
          %1477 = dma.vmem_to_hbm [thread:$0]  %s1475, 128, %s1472, %s1460
        $region80: #{tpu_custom_call.1} parent=47 // pred_fallthru
          _
      $region48: #{tpu_custom_call.1} parent=5 // pred_fallthru
        _
      %p1478 = scmp.le.s32.totalorder 2, %s23
      // Predicated region
      $region81: #{tpu_custom_call.1} parent=5 // pred_check
        %p1479 = pneg %p1478
      $region82: #{tpu_custom_call.1} parent=5 // pred_check_branch
        %1481 = sbr.rel (%p1479) target = $region84
      $region83: #{tpu_custom_call.1} parent=5 // pred_region
        %s1482 = ssub.s32 %s23, 2
        // Predicated region
        $region85: #{tpu_custom_call.1} parent=83 // pred_check
          %p1483 = pneg %p247
        $region86: #{tpu_custom_call.1} parent=83 // pred_check_branch
          %1485 = sbr.rel (%p1483) target = $region88
        $region87: #{tpu_custom_call.1} parent=83 // pred_region
          %s1486 = sand.u32 %s232, 1
          %s1487 = scalar_lea.sflag [#allocation5], %s1486
          %s1488 = sand.u32 %s232, 1
          %s1489 = smul.addr %s1488, 8
          %s1490 = scalar_lea.vmem [#allocation12], %s1489
          %1491 = dma.done %s1487, 128
        $region88: #{tpu_custom_call.1} parent=83 // pred_fallthru
          _
      $region84: #{tpu_custom_call.1} parent=5 // pred_fallthru
        _
    $region6: #{tpu_custom_call.1} parent=1 // loop_footer
      %s27 = sadd.s32 1, %s23
    $region7: #{tpu_custom_call.1} parent=1 // loop_footer_branch
      %22 = sbr.rel target = $region3
    $region8: #{tpu_custom_call.1} parent=1 // loop_exit
      _
    %1492 = vsyncpa [#allocation4], 1
    %s1493 = scalar_lea.sflag [#allocation4], 1
    %1494 = vsyncpa %s1493, 1
    %1495 = vsyncpa [#allocation7], 1
    %s1496 = scalar_lea.sflag [#allocation7], 1
    %1497 = vsyncpa %s1496, 1
    %1498 = vsyncpa [#allocation10], 1
    %1499 = vsyncpa [#allocation5], 1
    %s1500 = scalar_lea.sflag [#allocation5], 1
    %1501 = vsyncpa %s1500, 1

</llo_original>
